<compile_context>
chip_gen: v5e
topology: v5e:2x2
jax: 0.10.0
libtpu: 0.0.40
codegen_flags: <defaults>
</compile_context>

<pallas_src>
import math
import numpy as np
import jax
import jax.numpy as jnp
from jax.experimental import pallas as pl
from jax.experimental.pallas import tpu as pltpu  # noqa: F401  (TPU backend assumed)

NEG_BIG = -9000000000000000.0  # same constant as the torch code
LEAKY_SLOPE = 0.01             # torch nn.LeakyReLU default


# ---------------------------------------------------------------------------
# a_input row-index tables (exact reproduction of the torch reshuffle)
# ---------------------------------------------------------------------------
def a_input_row_indices(N):
    """Which h_embedding row feeds a_input[..., :F] and a_input[..., F:].

    Derived by pushing an arange probe through the *exact* torch sequence
        cat([x.repeat(1,1,N).view(1,N*N,-1), x.repeat(1,N,1)], dim=1).view(1,N,N,-1)
    so it stays faithful to the nonstandard cat(dim=1) ordering for any N.
    """
    idx = np.arange(N, dtype=np.int64).reshape(1, N, 1)
    part1 = np.tile(idx, (1, 1, N)).reshape(1, N * N, 1)
    part2 = np.tile(idx, (1, N, 1))
    a_in = np.concatenate([part1, part2], axis=1).reshape(1, N, N, 2)
    return a_in[0, :, :, 0], a_in[0, :, :, 1]


def build_gather_constants(N, no_A):
    """Constant matrices so the a_input gather becomes plain matmuls in-kernel.

    scores_k[i, j] = u_k[idx1[i, j]] + v_k[idx2[i, j]]
                   = (G1 @ kron(I_N, u_k) + G2 @ kron(I_N, v_k))[i, j]
    kron(I_N, u_k)[j*N + r, j'] = (j == j') * u_k[r] = KMASK * (TILE @ u_k)
    """
    idx1, idx2 = a_input_row_indices(N)
    G1 = np.zeros((N, N * N), np.float32)
    G2 = np.zeros((N, N * N), np.float32)
    for i in range(N):
        for j in range(N):
            G1[i, j * N + int(idx1[i, j])] = 1.0
            G2[i, j * N + int(idx2[i, j])] = 1.0
    TILE = np.tile(np.eye(N, dtype=np.float32), (N, 1))        # (N*N, N): row j*N+r -> e_r
    KMASK = np.repeat(np.eye(N, dtype=np.float32), N, axis=0)  # (N*N, N): row j*N+r -> e_j
    return (jnp.asarray(G1), jnp.asarray(G2), jnp.asarray(TILE), jnp.asarray(KMASK))


# ---------------------------------------------------------------------------
# Single fused Pallas kernel for the whole dense GCN stack
# ---------------------------------------------------------------------------
def make_fused_gcn_kernel(blocks_per_layer, no_A, feat, N):
    """blocks_per_layer[r] = number of feat-wide input blocks of layer r (1, 2, ..)."""
    n_layers = len(blocks_per_layer)

    def kernel(v_ref, adj_ref, g1_ref, g2_ref, tile_ref, kmask_ref, *rest):
        w_refs = rest[:-1]           # 5 refs per layer: W_all, emb_blk, a2_blk, sq_w_t, sq_b
        o_ref = rest[-1]

        G1 = g1_ref[...]
        G2 = g2_ref[...]
        TILE = tile_ref[...]
        KMASK = kmask_ref[...]

        feats = [v_ref[...]]         # growing dense feature map, kept in registers

        for li, nb in enumerate(blocks_per_layer):
            w_all = w_refs[5 * li][...]        # (nb*feat, (no_A+1)*feat)
            emb = w_refs[5 * li + 1][...]      # ((no_A+1)*feat, no_A*Fe)
            a2 = w_refs[5 * li + 2][...]       # (no_A*Fe, 2*no_A)
            sqw = w_refs[5 * li + 3][...]      # ((no_A+1)*feat, feat)
            sqb = w_refs[5 * li + 4][...]      # (1, feat)

            # h_all = [V | y0 | ...] @ W_all, split over the feat-wide blocks so the
            # concatenated layer input never needs to be materialized.
            h_all = jnp.dot(feats[0], w_all[0:feat, :],
                            preferred_element_type=jnp.float32)
            for b in range(1, nb):
                h_all = h_all + jnp.dot(feats[b], w_all[b * feat:(b + 1) * feat, :],
                                        preferred_element_type=jnp.float32)

            h_emb = jnp.dot(h_all, emb, preferred_element_type=jnp.float32)  # (N, no_A*Fe)
            uv = jnp.dot(h_emb, a2, preferred_element_type=jnp.float32)      # (N, 2*no_A)
            tfull = jnp.dot(TILE, uv, preferred_element_type=jnp.float32)    # (N*N, 2*no_A)

            # Identity-adjacency head: softmax of an identity-masked row is exactly
            # one-hot, so h_prime == h.  Fold its squeeze contribution directly.
            acc = jnp.dot(h_all[:, no_A * feat:], sqw[no_A * feat:, :],
                          preferred_element_type=jnp.float32)

            for k in range(no_A):              # static unroll over real adjacencies
                su = KMASK * tfull[:, k:k + 1]                    # kron(I_N, u_k)
                sv = KMASK * tfull[:, no_A + k:no_A + k + 1]      # kron(I_N, v_k)
                s = (jnp.dot(G1, su, preferred_element_type=jnp.float32)
                     + jnp.dot(G2, sv, preferred_element_type=jnp.float32))  # (N, N)
                e = jnp.where(s > 0, s, LEAKY_SLOPE * s)
                masked = jnp.where(adj_ref[k] > 0, e, NEG_BIG)
                m = jnp.max(masked, axis=-1, keepdims=True)
                p = jnp.exp(masked - m)
                attn = p / jnp.sum(p, axis=-1, keepdims=True)     # exact softmax
                # TODO(synk): F.dropout(p=0.1) on attn skipped (eval-mode identity).
                hp = jnp.dot(attn, h_all[:, k * feat:(k + 1) * feat],
                             preferred_element_type=jnp.float32)
                acc = acc + jnp.dot(hp, sqw[k * feat:(k + 1) * feat, :],
                                    preferred_element_type=jnp.float32)

            y = acc + sqb
            y = jnp.where(y > 0, y, LEAKY_SLOPE * y)
            if nb == 1:                         # in_features == out_features -> residual
                y = y + feats[0]

            if li < n_layers - 1:
                feats.append(y)
            else:
                o_ref[...] = y

    return kernel


def _full_spec(shape):
    nd = len(shape)
    return pl.BlockSpec(tuple(shape), lambda *_, nd=nd: (0,) * nd)


def _cost_estimate(blocks_per_layer, no_A, feat, N):
    Fe = feat // 8
    H = no_A + 1
    flops = 0
    for nb in blocks_per_layer:
        flops += 2 * N * (nb * feat) * (H * feat)          # projection
        flops += 2 * N * (H * feat) * (no_A * Fe)          # embedding
        flops += 2 * N * (no_A * Fe) * (2 * no_A)          # a-projection
        flops += 2 * (N * N) * N * (2 * no_A)              # kron spread
        flops += no_A * 2 * (2 * N * (N * N) * N)          # gather matmuls
        flops += no_A * (2 * N * N * feat)                 # attn @ h
        flops += H * (2 * N * feat * feat)                 # squeeze Linear
    transcendentals = len(blocks_per_layer) * no_A * N * N
    return int(flops), int(transcendentals)


# ---------------------------------------------------------------------------
# Parameter initialization (deterministic, xavier-uniform style)
# ---------------------------------------------------------------------------
def xavier_uniform(key, shape):
    fan_in, fan_out = shape[0], shape[1]
    limit = math.sqrt(6.0 / (fan_in + fan_out))
    return jax.random.uniform(key, shape, jnp.float32, -limit, limit)


def init_gat_layer(key, no_A, in_f, out_f):
    H = no_A + 1
    Fe = out_f // 8
    keys = jax.random.split(key, 3 * H + 2)
    W = [xavier_uniform(keys[i], (in_f, out_f)) for i in range(H)]
    a = [xavier_uniform(keys[H + i], (2 * Fe, 1)) for i in range(H)]
    emb = [xavier_uniform(keys[2 * H + i], (out_f, Fe)) for i in range(H)]
    fan_in = out_f * H
    bound = 1.0 / math.sqrt(fan_in)
    sq_w_t = jax.random.uniform(keys[-2], (fan_in, out_f), jnp.float32, -bound, bound)
    sq_b = jax.random.uniform(keys[-1], (1, out_f), jnp.float32, -bound, bound)

    # Stacked / block-diagonal packing so the fused kernel handles every head at once.
    # (The identity head's a/emb are mathematically dead in the torch module too.)
    W_all = jnp.concatenate(W, axis=1)                       # (in_f, H*out_f)
    emb_blk = jnp.zeros((H * out_f, no_A * Fe), jnp.float32)
    a2_blk = jnp.zeros((no_A * Fe, 2 * no_A), jnp.float32)
    for k in range(no_A):
        emb_blk = emb_blk.at[k * out_f:(k + 1) * out_f, k * Fe:(k + 1) * Fe].set(emb[k])
        a2_blk = a2_blk.at[k * Fe:(k + 1) * Fe, k].set(a[k][:Fe, 0])
        a2_blk = a2_blk.at[k * Fe:(k + 1) * Fe, no_A + k].set(a[k][Fe:, 0])

    return dict(W_all=W_all, emb_blk=emb_blk, a2_blk=a2_blk,
                sq_w_t=sq_w_t, sq_b=sq_b,
                W_list=W, a_list=a, emb_list=emb,   # kept only for the pure-JAX reference
                in_f=in_f, out_f=out_f, no_A=no_A)


def init_dense_gcn(key, input_feature, no_A, repeat_time):
    keys = jax.random.split(key, repeat_time + 1)
    layers = [init_gat_layer(keys[r], no_A, input_feature * (r + 1), input_feature)
              for r in range(repeat_time)]
    squeeze_block = init_gat_layer(keys[-1], no_A,
                                   input_feature * (repeat_time + 1), input_feature)
    return dict(layers=layers, squeeze_block=squeeze_block,
                input_feature=input_feature, no_A=no_A)


# ---------------------------------------------------------------------------
# Forward pass: one fused pallas_call for the whole stack
# ---------------------------------------------------------------------------
def dense_gcn_forward(params, V, A):
    assert V.shape[0] == 1, "torch reference's view(1, N*N, -1) requires batch size 1"
    N = V.shape[1]
    feat = params["input_feature"]
    no_A = params["no_A"]
    all_layers = params["layers"] + [params["squeeze_block"]]
    blocks_per_layer = [lp["in_f"] // feat for lp in all_layers]

    G1, G2, TILE, KMASK = build_gather_constants(N, no_A)
    A_stack = jnp.transpose(A[0].astype(jnp.float32), (1, 0, 2))   # (no_A, N, N)

    inputs = [V[0].astype(jnp.float32), A_stack, G1, G2, TILE, KMASK]
    for lp in all_layers:
        inputs += [lp["W_all"], lp["emb_blk"], lp["a2_blk"], lp["sq_w_t"], lp["sq_b"]]

    kernel = make_fused_gcn_kernel(blocks_per_layer, no_A, feat, N)
    flops, transcendentals = _cost_estimate(blocks_per_layer, no_A, feat, N)
    bytes_accessed = int(sum(int(np.prod(x.shape)) for x in inputs) * 4 + N * feat * 4)

    out = pl.pallas_call(
        kernel,
        out_shape=jax.ShapeDtypeStruct((N, feat), jnp.float32),
        in_specs=[_full_spec(x.shape) for x in inputs],
        out_specs=_full_spec((N, feat)),
        cost_estimate=pl.CostEstimate(flops=flops,
                                      transcendentals=transcendentals,
                                      bytes_accessed=bytes_accessed),
    )(*inputs)
    return out[None], A


# ---------------------------------------------------------------------------
# Pure-JAX reference (direct transcription of the torch forward, eval mode)
# ---------------------------------------------------------------------------
def reference_gat_layer(p, V, A):
    N = V.shape[1]
    V2 = V[0]
    no_A, in_f, out_f = p["no_A"], p["in_f"], p["out_f"]
    hps = []
    for k in range(no_A + 1):
        h = V2 @ p["W_list"][k]
        h_emb = h @ p["emb_list"][k]
        he = h_emb[None]
        part1 = jnp.tile(he, (1, 1, N)).reshape(1, N * N, -1)
        part2 = jnp.tile(he, (1, N, 1))
        a_input = jnp.concatenate([part1, part2], axis=1).reshape(1, N, N, -1)
        e = (a_input @ p["a_list"][k])[0, :, :, 0]
        e = jnp.where(e > 0, e, LEAKY_SLOPE * e)
        adj = A[0, :, k, :] if k < no_A else jnp.eye(N, dtype=jnp.float32)
        masked = jnp.where(adj > 0, e, NEG_BIG)
        attn = jax.nn.softmax(masked, axis=-1)
        hps.append(attn @ h)
    cat = jnp.concatenate(hps, axis=-1)
    y = cat @ p["sq_w_t"] + p["sq_b"]
    y = jnp.where(y > 0, y, LEAKY_SLOPE * y)
    if in_f == out_f:
        y = y + V2
    return y[None]


def reference_forward(params, V, A):
    input_V = V
    for lp in params["layers"]:
        update_V = reference_gat_layer(lp, input_V, A)
        input_V = jnp.concatenate([input_V, update_V], axis=-1)
    return reference_gat_layer(params["squeeze_block"], input_V, A)


# ---------------------------------------------------------------------------
if __name__ == "__main__":
    key = jax.random.PRNGKey(0)
    k_param, k_v, k_a = jax.random.split(key, 3)

    input_feature, no_A, repeat_time = 32, 2, 2
    B, N = 1, 8  # batch must be 1 (torch view(1, N*N, -1))

    params = init_dense_gcn(k_param, input_feature, no_A, repeat_time)
    V = jax.random.normal(k_v, (B, N, input_feature), dtype=jnp.float32)
    A = (jax.random.uniform(k_a, (B, N, no_A, N)) > 0.5).astype(jnp.float32)

    fwd = jax.jit(lambda V_, A_: dense_gcn_forward(params, V_, A_))
    out, A_out = fwd(V, A)
    jax.block_until_ready(out)
    assert out.shape == (B, N, input_feature)

    # Sanity check against a direct transcription of the torch forward.
    ref = reference_forward(params, V, A)
    np.testing.assert_allclose(np.asarray(out), np.asarray(ref), rtol=2e-2, atol=2e-2)

    print("KERNEL_OK")
</pallas_src>

<mosaic_0001>
module attributes {stable_mosaic.version = 11 : i64} {
  func.func @kernel(%arg0: memref<8x32xf32, #tpu.memory_space<vmem>>, %arg1: memref<2x8x8xf32, #tpu.memory_space<vmem>>, %arg2: memref<8x64xf32, #tpu.memory_space<vmem>>, %arg3: memref<8x64xf32, #tpu.memory_space<vmem>>, %arg4: memref<64x8xf32, #tpu.memory_space<vmem>>, %arg5: memref<64x8xf32, #tpu.memory_space<vmem>>, %arg6: memref<32x96xf32, #tpu.memory_space<vmem>>, %arg7: memref<96x8xf32, #tpu.memory_space<vmem>>, %arg8: memref<8x4xf32, #tpu.memory_space<vmem>>, %arg9: memref<96x32xf32, #tpu.memory_space<vmem>>, %arg10: memref<1x32xf32, #tpu.memory_space<vmem>>, %arg11: memref<64x96xf32, #tpu.memory_space<vmem>>, %arg12: memref<96x8xf32, #tpu.memory_space<vmem>>, %arg13: memref<8x4xf32, #tpu.memory_space<vmem>>, %arg14: memref<96x32xf32, #tpu.memory_space<vmem>>, %arg15: memref<1x32xf32, #tpu.memory_space<vmem>>, %arg16: memref<96x96xf32, #tpu.memory_space<vmem>>, %arg17: memref<96x8xf32, #tpu.memory_space<vmem>>, %arg18: memref<8x4xf32, #tpu.memory_space<vmem>>, %arg19: memref<96x32xf32, #tpu.memory_space<vmem>>, %arg20: memref<1x32xf32, #tpu.memory_space<vmem>>, %arg21: memref<8x32xf32, #tpu.memory_space<vmem>>) attributes {dimension_semantics = [], scalar_prefetch = 0 : i64, scratch_operands = 0 : i64, tpu.core_type = #tpu.core_type<tc>} {
    %c0 = arith.constant 0 : index
    %c0_0 = arith.constant 0 : index
    %0 = vector.load %arg2[%c0, %c0_0] : memref<8x64xf32, #tpu.memory_space<vmem>>, vector<8x64xf32>
    %c0_1 = arith.constant 0 : index
    %c0_2 = arith.constant 0 : index
    %1 = vector.load %arg3[%c0_1, %c0_2] : memref<8x64xf32, #tpu.memory_space<vmem>>, vector<8x64xf32>
    %c0_3 = arith.constant 0 : index
    %c0_4 = arith.constant 0 : index
    %2 = vector.load %arg4[%c0_3, %c0_4] : memref<64x8xf32, #tpu.memory_space<vmem>>, vector<64x8xf32>
    %c0_5 = arith.constant 0 : index
    %c0_6 = arith.constant 0 : index
    %3 = vector.load %arg5[%c0_5, %c0_6] : memref<64x8xf32, #tpu.memory_space<vmem>>, vector<64x8xf32>
    %c0_7 = arith.constant 0 : index
    %c0_8 = arith.constant 0 : index
    %4 = vector.load %arg0[%c0_7, %c0_8] : memref<8x32xf32, #tpu.memory_space<vmem>>, vector<8x32xf32>
    %c0_9 = arith.constant 0 : index
    %c0_10 = arith.constant 0 : index
    %5 = vector.load %arg6[%c0_9, %c0_10] : memref<32x96xf32, #tpu.memory_space<vmem>>, vector<32x96xf32>
    %c0_11 = arith.constant 0 : index
    %c0_12 = arith.constant 0 : index
    %6 = vector.load %arg7[%c0_11, %c0_12] : memref<96x8xf32, #tpu.memory_space<vmem>>, vector<96x8xf32>
    %c0_13 = arith.constant 0 : index
    %c0_14 = arith.constant 0 : index
    %7 = vector.load %arg8[%c0_13, %c0_14] : memref<8x4xf32, #tpu.memory_space<vmem>>, vector<8x4xf32>
    %c0_15 = arith.constant 0 : index
    %c0_16 = arith.constant 0 : index
    %8 = vector.load %arg9[%c0_15, %c0_16] : memref<96x32xf32, #tpu.memory_space<vmem>>, vector<96x32xf32>
    %c0_17 = arith.constant 0 : index
    %c0_18 = arith.constant 0 : index
    %9 = vector.load %arg10[%c0_17, %c0_18] : memref<1x32xf32, #tpu.memory_space<vmem>>, vector<1x32xf32>
    %cst = arith.constant dense<0.000000e+00> : vector<8x96xf32>
    %10 = tpu.matmul %4, %5, %cst {dimension_numbers = #tpu.dot_dimension_numbers<[1], [0], [0], [1], [0, 0, 1, 1], [], []>} : vector<8x32xf32>, vector<32x96xf32>, vector<8x96xf32> -> vector<8x96xf32>
    %cst_19 = arith.constant dense<0.000000e+00> : vector<8x8xf32>
    %11 = tpu.matmul %10, %6, %cst_19 {dimension_numbers = #tpu.dot_dimension_numbers<[1], [0], [0], [1], [0, 0, 1, 1], [], []>} : vector<8x96xf32>, vector<96x8xf32>, vector<8x8xf32> -> vector<8x8xf32>
    %cst_20 = arith.constant dense<0.000000e+00> : vector<8x4xf32>
    %12 = tpu.matmul %11, %7, %cst_20 {dimension_numbers = #tpu.dot_dimension_numbers<[1], [0], [0], [1], [0, 0, 1, 1], [], []>} : vector<8x8xf32>, vector<8x4xf32>, vector<8x4xf32> -> vector<8x4xf32>
    %cst_21 = arith.constant dense<0.000000e+00> : vector<64x4xf32>
    %13 = tpu.matmul %2, %12, %cst_21 {dimension_numbers = #tpu.dot_dimension_numbers<[1], [0], [0], [1], [0, 0, 1, 1], [], []>} : vector<64x8xf32>, vector<8x4xf32>, vector<64x4xf32> -> vector<64x4xf32>
    %14 = vector.extract_strided_slice %10 {offsets = [0, 64], sizes = [8, 32], strides = [1, 1]} : vector<8x96xf32> to vector<8x32xf32>
    %15 = vector.extract_strided_slice %8 {offsets = [64, 0], sizes = [32, 32], strides = [1, 1]} : vector<96x32xf32> to vector<32x32xf32>
    %cst_22 = arith.constant dense<0.000000e+00> : vector<8x32xf32>
    %16 = tpu.matmul %14, %15, %cst_22 {dimension_numbers = #tpu.dot_dimension_numbers<[1], [0], [0], [1], [0, 0, 1, 1], [], []>} : vector<8x32xf32>, vector<32x32xf32>, vector<8x32xf32> -> vector<8x32xf32>
    %17 = vector.extract_strided_slice %13 {offsets = [0, 0], sizes = [64, 1], strides = [1, 1]} : vector<64x4xf32> to vector<64x1xf32>
    %18 = vector.broadcast %17 : vector<64x1xf32> to vector<64x8xf32>
    %19 = arith.mulf %3, %18 : vector<64x8xf32>
    %20 = vector.extract_strided_slice %13 {offsets = [0, 2], sizes = [64, 1], strides = [1, 1]} : vector<64x4xf32> to vector<64x1xf32>
    %21 = vector.broadcast %20 : vector<64x1xf32> to vector<64x8xf32>
    %22 = arith.mulf %3, %21 : vector<64x8xf32>
    %cst_23 = arith.constant dense<0.000000e+00> : vector<8x8xf32>
    %23 = tpu.matmul %0, %19, %cst_23 {dimension_numbers = #tpu.dot_dimension_numbers<[1], [0], [0], [1], [0, 0, 1, 1], [], []>} : vector<8x64xf32>, vector<64x8xf32>, vector<8x8xf32> -> vector<8x8xf32>
    %cst_24 = arith.constant dense<0.000000e+00> : vector<8x8xf32>
    %24 = tpu.matmul %1, %22, %cst_24 {dimension_numbers = #tpu.dot_dimension_numbers<[1], [0], [0], [1], [0, 0, 1, 1], [], []>} : vector<8x64xf32>, vector<64x8xf32>, vector<8x8xf32> -> vector<8x8xf32>
    %25 = arith.addf %23, %24 : vector<8x8xf32>
    %cst_25 = arith.constant 0.000000e+00 : f32
    %26 = vector.broadcast %cst_25 : f32 to vector<8x8xf32>
    %27 = arith.cmpf ogt, %25, %26 : vector<8x8xf32>
    %cst_26 = arith.constant 0.00999999977 : f32
    %28 = vector.broadcast %cst_26 : f32 to vector<8x8xf32>
    %29 = arith.mulf %28, %25 : vector<8x8xf32>
    %30 = arith.select %27, %25, %29 : vector<8x8xi1>, vector<8x8xf32>
    %c0_27 = arith.constant 0 : index
    %c0_28 = arith.constant 0 : index
    %c0_29 = arith.constant 0 : index
    %31 = vector.load %arg1[%c0_27, %c0_28, %c0_29] : memref<2x8x8xf32, #tpu.memory_space<vmem>>, vector<1x8x8xf32>
    %32 = vector.shape_cast %31 : vector<1x8x8xf32> to vector<8x8xf32>
    %cst_30 = arith.constant 0.000000e+00 : f32
    %33 = vector.broadcast %cst_30 : f32 to vector<8x8xf32>
    %34 = arith.cmpf ogt, %32, %33 : vector<8x8xf32>
    %cst_31 = arith.constant -9.000000e+15 : f32
    %35 = vector.broadcast %cst_31 : f32 to vector<8x8xf32>
    %36 = arith.select %34, %30, %35 : vector<8x8xi1>, vector<8x8xf32>
    %cst_32 = arith.constant dense<0xFF800000> : vector<8xf32>
    %37 = vector.multi_reduction <maximumf>, %36, %cst_32 [1] : vector<8x8xf32> to vector<8xf32>
    %38 = vector.shape_cast %37 : vector<8xf32> to vector<8x1xf32>
    %39 = vector.broadcast %38 : vector<8x1xf32> to vector<8x8xf32>
    %40 = arith.subf %36, %39 : vector<8x8xf32>
    %41 = math.exp %40 : vector<8x8xf32>
    %cst_33 = arith.constant dense<0.000000e+00> : vector<8xf32>
    %42 = vector.multi_reduction <add>, %41, %cst_33 [1] : vector<8x8xf32> to vector<8xf32>
    %43 = vector.shape_cast %42 : vector<8xf32> to vector<8x1xf32>
    %44 = vector.broadcast %43 : vector<8x1xf32> to vector<8x8xf32>
    %45 = arith.divf %41, %44 : vector<8x8xf32>
    %46 = vector.extract_strided_slice %10 {offsets = [0, 0], sizes = [8, 32], strides = [1, 1]} : vector<8x96xf32> to vector<8x32xf32>
    %cst_34 = arith.constant dense<0.000000e+00> : vector<8x32xf32>
    %47 = tpu.matmul %45, %46, %cst_34 {dimension_numbers = #tpu.dot_dimension_numbers<[1], [0], [0], [1], [0, 0, 1, 1], [], []>} : vector<8x8xf32>, vector<8x32xf32>, vector<8x32xf32> -> vector<8x32xf32>
    %48 = vector.extract_strided_slice %8 {offsets = [0, 0], sizes = [32, 32], strides = [1, 1]} : vector<96x32xf32> to vector<32x32xf32>
    %cst_35 = arith.constant dense<0.000000e+00> : vector<8x32xf32>
    %49 = tpu.matmul %47, %48, %cst_35 {dimension_numbers = #tpu.dot_dimension_numbers<[1], [0], [0], [1], [0, 0, 1, 1], [], []>} : vector<8x32xf32>, vector<32x32xf32>, vector<8x32xf32> -> vector<8x32xf32>
    %50 = arith.addf %16, %49 : vector<8x32xf32>
    %51 = vector.extract_strided_slice %13 {offsets = [0, 1], sizes = [64, 1], strides = [1, 1]} : vector<64x4xf32> to vector<64x1xf32>
    %52 = vector.broadcast %51 : vector<64x1xf32> to vector<64x8xf32>
    %53 = arith.mulf %3, %52 : vector<64x8xf32>
    %54 = vector.extract_strided_slice %13 {offsets = [0, 3], sizes = [64, 1], strides = [1, 1]} : vector<64x4xf32> to vector<64x1xf32>
    %55 = vector.broadcast %54 : vector<64x1xf32> to vector<64x8xf32>
    %56 = arith.mulf %3, %55 : vector<64x8xf32>
    %cst_36 = arith.constant dense<0.000000e+00> : vector<8x8xf32>
    %57 = tpu.matmul %0, %53, %cst_36 {dimension_numbers = #tpu.dot_dimension_numbers<[1], [0], [0], [1], [0, 0, 1, 1], [], []>} : vector<8x64xf32>, vector<64x8xf32>, vector<8x8xf32> -> vector<8x8xf32>
    %cst_37 = arith.constant dense<0.000000e+00> : vector<8x8xf32>
    %58 = tpu.matmul %1, %56, %cst_37 {dimension_numbers = #tpu.dot_dimension_numbers<[1], [0], [0], [1], [0, 0, 1, 1], [], []>} : vector<8x64xf32>, vector<64x8xf32>, vector<8x8xf32> -> vector<8x8xf32>
    %59 = arith.addf %57, %58 : vector<8x8xf32>
    %cst_38 = arith.constant 0.000000e+00 : f32
    %60 = vector.broadcast %cst_38 : f32 to vector<8x8xf32>
    %61 = arith.cmpf ogt, %59, %60 : vector<8x8xf32>
    %cst_39 = arith.constant 0.00999999977 : f32
    %62 = vector.broadcast %cst_39 : f32 to vector<8x8xf32>
    %63 = arith.mulf %62, %59 : vector<8x8xf32>
    %64 = arith.select %61, %59, %63 : vector<8x8xi1>, vector<8x8xf32>
    %c1 = arith.constant 1 : index
    %c0_40 = arith.constant 0 : index
    %c0_41 = arith.constant 0 : index
    %65 = vector.load %arg1[%c1, %c0_40, %c0_41] : memref<2x8x8xf32, #tpu.memory_space<vmem>>, vector<1x8x8xf32>
    %66 = vector.shape_cast %65 : vector<1x8x8xf32> to vector<8x8xf32>
    %cst_42 = arith.constant 0.000000e+00 : f32
    %67 = vector.broadcast %cst_42 : f32 to vector<8x8xf32>
    %68 = arith.cmpf ogt, %66, %67 : vector<8x8xf32>
    %cst_43 = arith.constant -9.000000e+15 : f32
    %69 = vector.broadcast %cst_43 : f32 to vector<8x8xf32>
    %70 = arith.select %68, %64, %69 : vector<8x8xi1>, vector<8x8xf32>
    %cst_44 = arith.constant dense<0xFF800000> : vector<8xf32>
    %71 = vector.multi_reduction <maximumf>, %70, %cst_44 [1] : vector<8x8xf32> to vector<8xf32>
    %72 = vector.shape_cast %71 : vector<8xf32> to vector<8x1xf32>
    %73 = vector.broadcast %72 : vector<8x1xf32> to vector<8x8xf32>
    %74 = arith.subf %70, %73 : vector<8x8xf32>
    %75 = math.exp %74 : vector<8x8xf32>
    %cst_45 = arith.constant dense<0.000000e+00> : vector<8xf32>
    %76 = vector.multi_reduction <add>, %75, %cst_45 [1] : vector<8x8xf32> to vector<8xf32>
    %77 = vector.shape_cast %76 : vector<8xf32> to vector<8x1xf32>
    %78 = vector.broadcast %77 : vector<8x1xf32> to vector<8x8xf32>
    %79 = arith.divf %75, %78 : vector<8x8xf32>
    %80 = vector.extract_strided_slice %10 {offsets = [0, 32], sizes = [8, 32], strides = [1, 1]} : vector<8x96xf32> to vector<8x32xf32>
    %cst_46 = arith.constant dense<0.000000e+00> : vector<8x32xf32>
    %81 = tpu.matmul %79, %80, %cst_46 {dimension_numbers = #tpu.dot_dimension_numbers<[1], [0], [0], [1], [0, 0, 1, 1], [], []>} : vector<8x8xf32>, vector<8x32xf32>, vector<8x32xf32> -> vector<8x32xf32>
    %82 = vector.extract_strided_slice %8 {offsets = [32, 0], sizes = [32, 32], strides = [1, 1]} : vector<96x32xf32> to vector<32x32xf32>
    %cst_47 = arith.constant dense<0.000000e+00> : vector<8x32xf32>
    %83 = tpu.matmul %81, %82, %cst_47 {dimension_numbers = #tpu.dot_dimension_numbers<[1], [0], [0], [1], [0, 0, 1, 1], [], []>} : vector<8x32xf32>, vector<32x32xf32>, vector<8x32xf32> -> vector<8x32xf32>
    %84 = arith.addf %50, %83 : vector<8x32xf32>
    %85 = vector.broadcast %9 : vector<1x32xf32> to vector<8x32xf32>
    %86 = arith.addf %84, %85 : vector<8x32xf32>
    %cst_48 = arith.constant 0.000000e+00 : f32
    %87 = vector.broadcast %cst_48 : f32 to vector<8x32xf32>
    %88 = arith.cmpf ogt, %86, %87 : vector<8x32xf32>
    %cst_49 = arith.constant 0.00999999977 : f32
    %89 = vector.broadcast %cst_49 : f32 to vector<8x32xf32>
    %90 = arith.mulf %89, %86 : vector<8x32xf32>
    %91 = arith.select %88, %86, %90 : vector<8x32xi1>, vector<8x32xf32>
    %92 = arith.addf %91, %4 : vector<8x32xf32>
    %c0_50 = arith.constant 0 : index
    %c0_51 = arith.constant 0 : index
    %93 = vector.load %arg11[%c0_50, %c0_51] : memref<64x96xf32, #tpu.memory_space<vmem>>, vector<64x96xf32>
    %c0_52 = arith.constant 0 : index
    %c0_53 = arith.constant 0 : index
    %94 = vector.load %arg12[%c0_52, %c0_53] : memref<96x8xf32, #tpu.memory_space<vmem>>, vector<96x8xf32>
    %c0_54 = arith.constant 0 : index
    %c0_55 = arith.constant 0 : index
    %95 = vector.load %arg13[%c0_54, %c0_55] : memref<8x4xf32, #tpu.memory_space<vmem>>, vector<8x4xf32>
    %c0_56 = arith.constant 0 : index
    %c0_57 = arith.constant 0 : index
    %96 = vector.load %arg14[%c0_56, %c0_57] : memref<96x32xf32, #tpu.memory_space<vmem>>, vector<96x32xf32>
    %c0_58 = arith.constant 0 : index
    %c0_59 = arith.constant 0 : index
    %97 = vector.load %arg15[%c0_58, %c0_59] : memref<1x32xf32, #tpu.memory_space<vmem>>, vector<1x32xf32>
    %98 = vector.extract_strided_slice %93 {offsets = [0, 0], sizes = [32, 96], strides = [1, 1]} : vector<64x96xf32> to vector<32x96xf32>
    %cst_60 = arith.constant dense<0.000000e+00> : vector<8x96xf32>
    %99 = tpu.matmul %4, %98, %cst_60 {dimension_numbers = #tpu.dot_dimension_numbers<[1], [0], [0], [1], [0, 0, 1, 1], [], []>} : vector<8x32xf32>, vector<32x96xf32>, vector<8x96xf32> -> vector<8x96xf32>
    %100 = vector.extract_strided_slice %93 {offsets = [32, 0], sizes = [32, 96], strides = [1, 1]} : vector<64x96xf32> to vector<32x96xf32>
    %cst_61 = arith.constant dense<0.000000e+00> : vector<8x96xf32>
    %101 = tpu.matmul %92, %100, %cst_61 {dimension_numbers = #tpu.dot_dimension_numbers<[1], [0], [0], [1], [0, 0, 1, 1], [], []>} : vector<8x32xf32>, vector<32x96xf32>, vector<8x96xf32> -> vector<8x96xf32>
    %102 = arith.addf %99, %101 : vector<8x96xf32>
    %cst_62 = arith.constant dense<0.000000e+00> : vector<8x8xf32>
    %103 = tpu.matmul %102, %94, %cst_62 {dimension_numbers = #tpu.dot_dimension_numbers<[1], [0], [0], [1], [0, 0, 1, 1], [], []>} : vector<8x96xf32>, vector<96x8xf32>, vector<8x8xf32> -> vector<8x8xf32>
    %cst_63 = arith.constant dense<0.000000e+00> : vector<8x4xf32>
    %104 = tpu.matmul %103, %95, %cst_63 {dimension_numbers = #tpu.dot_dimension_numbers<[1], [0], [0], [1], [0, 0, 1, 1], [], []>} : vector<8x8xf32>, vector<8x4xf32>, vector<8x4xf32> -> vector<8x4xf32>
    %cst_64 = arith.constant dense<0.000000e+00> : vector<64x4xf32>
    %105 = tpu.matmul %2, %104, %cst_64 {dimension_numbers = #tpu.dot_dimension_numbers<[1], [0], [0], [1], [0, 0, 1, 1], [], []>} : vector<64x8xf32>, vector<8x4xf32>, vector<64x4xf32> -> vector<64x4xf32>
    %106 = vector.extract_strided_slice %102 {offsets = [0, 64], sizes = [8, 32], strides = [1, 1]} : vector<8x96xf32> to vector<8x32xf32>
    %107 = vector.extract_strided_slice %96 {offsets = [64, 0], sizes = [32, 32], strides = [1, 1]} : vector<96x32xf32> to vector<32x32xf32>
    %cst_65 = arith.constant dense<0.000000e+00> : vector<8x32xf32>
    %108 = tpu.matmul %106, %107, %cst_65 {dimension_numbers = #tpu.dot_dimension_numbers<[1], [0], [0], [1], [0, 0, 1, 1], [], []>} : vector<8x32xf32>, vector<32x32xf32>, vector<8x32xf32> -> vector<8x32xf32>
    %109 = vector.extract_strided_slice %105 {offsets = [0, 0], sizes = [64, 1], strides = [1, 1]} : vector<64x4xf32> to vector<64x1xf32>
    %110 = vector.broadcast %109 : vector<64x1xf32> to vector<64x8xf32>
    %111 = arith.mulf %3, %110 : vector<64x8xf32>
    %112 = vector.extract_strided_slice %105 {offsets = [0, 2], sizes = [64, 1], strides = [1, 1]} : vector<64x4xf32> to vector<64x1xf32>
    %113 = vector.broadcast %112 : vector<64x1xf32> to vector<64x8xf32>
    %114 = arith.mulf %3, %113 : vector<64x8xf32>
    %cst_66 = arith.constant dense<0.000000e+00> : vector<8x8xf32>
    %115 = tpu.matmul %0, %111, %cst_66 {dimension_numbers = #tpu.dot_dimension_numbers<[1], [0], [0], [1], [0, 0, 1, 1], [], []>} : vector<8x64xf32>, vector<64x8xf32>, vector<8x8xf32> -> vector<8x8xf32>
    %cst_67 = arith.constant dense<0.000000e+00> : vector<8x8xf32>
    %116 = tpu.matmul %1, %114, %cst_67 {dimension_numbers = #tpu.dot_dimension_numbers<[1], [0], [0], [1], [0, 0, 1, 1], [], []>} : vector<8x64xf32>, vector<64x8xf32>, vector<8x8xf32> -> vector<8x8xf32>
    %117 = arith.addf %115, %116 : vector<8x8xf32>
    %cst_68 = arith.constant 0.000000e+00 : f32
    %118 = vector.broadcast %cst_68 : f32 to vector<8x8xf32>
    %119 = arith.cmpf ogt, %117, %118 : vector<8x8xf32>
    %cst_69 = arith.constant 0.00999999977 : f32
    %120 = vector.broadcast %cst_69 : f32 to vector<8x8xf32>
    %121 = arith.mulf %120, %117 : vector<8x8xf32>
    %122 = arith.select %119, %117, %121 : vector<8x8xi1>, vector<8x8xf32>
    %c0_70 = arith.constant 0 : index
    %c0_71 = arith.constant 0 : index
    %c0_72 = arith.constant 0 : index
    %123 = vector.load %arg1[%c0_70, %c0_71, %c0_72] : memref<2x8x8xf32, #tpu.memory_space<vmem>>, vector<1x8x8xf32>
    %124 = vector.shape_cast %123 : vector<1x8x8xf32> to vector<8x8xf32>
    %cst_73 = arith.constant 0.000000e+00 : f32
    %125 = vector.broadcast %cst_73 : f32 to vector<8x8xf32>
    %126 = arith.cmpf ogt, %124, %125 : vector<8x8xf32>
    %cst_74 = arith.constant -9.000000e+15 : f32
    %127 = vector.broadcast %cst_74 : f32 to vector<8x8xf32>
    %128 = arith.select %126, %122, %127 : vector<8x8xi1>, vector<8x8xf32>
    %cst_75 = arith.constant dense<0xFF800000> : vector<8xf32>
    %129 = vector.multi_reduction <maximumf>, %128, %cst_75 [1] : vector<8x8xf32> to vector<8xf32>
    %130 = vector.shape_cast %129 : vector<8xf32> to vector<8x1xf32>
    %131 = vector.broadcast %130 : vector<8x1xf32> to vector<8x8xf32>
    %132 = arith.subf %128, %131 : vector<8x8xf32>
    %133 = math.exp %132 : vector<8x8xf32>
    %cst_76 = arith.constant dense<0.000000e+00> : vector<8xf32>
    %134 = vector.multi_reduction <add>, %133, %cst_76 [1] : vector<8x8xf32> to vector<8xf32>
    %135 = vector.shape_cast %134 : vector<8xf32> to vector<8x1xf32>
    %136 = vector.broadcast %135 : vector<8x1xf32> to vector<8x8xf32>
    %137 = arith.divf %133, %136 : vector<8x8xf32>
    %138 = vector.extract_strided_slice %102 {offsets = [0, 0], sizes = [8, 32], strides = [1, 1]} : vector<8x96xf32> to vector<8x32xf32>
    %cst_77 = arith.constant dense<0.000000e+00> : vector<8x32xf32>
    %139 = tpu.matmul %137, %138, %cst_77 {dimension_numbers = #tpu.dot_dimension_numbers<[1], [0], [0], [1], [0, 0, 1, 1], [], []>} : vector<8x8xf32>, vector<8x32xf32>, vector<8x32xf32> -> vector<8x32xf32>
    %140 = vector.extract_strided_slice %96 {offsets = [0, 0], sizes = [32, 32], strides = [1, 1]} : vector<96x32xf32> to vector<32x32xf32>
    %cst_78 = arith.constant dense<0.000000e+00> : vector<8x32xf32>
    %141 = tpu.matmul %139, %140, %cst_78 {dimension_numbers = #tpu.dot_dimension_numbers<[1], [0], [0], [1], [0, 0, 1, 1], [], []>} : vector<8x32xf32>, vector<32x32xf32>, vector<8x32xf32> -> vector<8x32xf32>
    %142 = arith.addf %108, %141 : vector<8x32xf32>
    %143 = vector.extract_strided_slice %105 {offsets = [0, 1], sizes = [64, 1], strides = [1, 1]} : vector<64x4xf32> to vector<64x1xf32>
    %144 = vector.broadcast %143 : vector<64x1xf32> to vector<64x8xf32>
    %145 = arith.mulf %3, %144 : vector<64x8xf32>
    %146 = vector.extract_strided_slice %105 {offsets = [0, 3], sizes = [64, 1], strides = [1, 1]} : vector<64x4xf32> to vector<64x1xf32>
    %147 = vector.broadcast %146 : vector<64x1xf32> to vector<64x8xf32>
    %148 = arith.mulf %3, %147 : vector<64x8xf32>
    %cst_79 = arith.constant dense<0.000000e+00> : vector<8x8xf32>
    %149 = tpu.matmul %0, %145, %cst_79 {dimension_numbers = #tpu.dot_dimension_numbers<[1], [0], [0], [1], [0, 0, 1, 1], [], []>} : vector<8x64xf32>, vector<64x8xf32>, vector<8x8xf32> -> vector<8x8xf32>
    %cst_80 = arith.constant dense<0.000000e+00> : vector<8x8xf32>
    %150 = tpu.matmul %1, %148, %cst_80 {dimension_numbers = #tpu.dot_dimension_numbers<[1], [0], [0], [1], [0, 0, 1, 1], [], []>} : vector<8x64xf32>, vector<64x8xf32>, vector<8x8xf32> -> vector<8x8xf32>
    %151 = arith.addf %149, %150 : vector<8x8xf32>
    %cst_81 = arith.constant 0.000000e+00 : f32
    %152 = vector.broadcast %cst_81 : f32 to vector<8x8xf32>
    %153 = arith.cmpf ogt, %151, %152 : vector<8x8xf32>
    %cst_82 = arith.constant 0.00999999977 : f32
    %154 = vector.broadcast %cst_82 : f32 to vector<8x8xf32>
    %155 = arith.mulf %154, %151 : vector<8x8xf32>
    %156 = arith.select %153, %151, %155 : vector<8x8xi1>, vector<8x8xf32>
    %c1_83 = arith.constant 1 : index
    %c0_84 = arith.constant 0 : index
    %c0_85 = arith.constant 0 : index
    %157 = vector.load %arg1[%c1_83, %c0_84, %c0_85] : memref<2x8x8xf32, #tpu.memory_space<vmem>>, vector<1x8x8xf32>
    %158 = vector.shape_cast %157 : vector<1x8x8xf32> to vector<8x8xf32>
    %cst_86 = arith.constant 0.000000e+00 : f32
    %159 = vector.broadcast %cst_86 : f32 to vector<8x8xf32>
    %160 = arith.cmpf ogt, %158, %159 : vector<8x8xf32>
    %cst_87 = arith.constant -9.000000e+15 : f32
    %161 = vector.broadcast %cst_87 : f32 to vector<8x8xf32>
    %162 = arith.select %160, %156, %161 : vector<8x8xi1>, vector<8x8xf32>
    %cst_88 = arith.constant dense<0xFF800000> : vector<8xf32>
    %163 = vector.multi_reduction <maximumf>, %162, %cst_88 [1] : vector<8x8xf32> to vector<8xf32>
    %164 = vector.shape_cast %163 : vector<8xf32> to vector<8x1xf32>
    %165 = vector.broadcast %164 : vector<8x1xf32> to vector<8x8xf32>
    %166 = arith.subf %162, %165 : vector<8x8xf32>
    %167 = math.exp %166 : vector<8x8xf32>
    %cst_89 = arith.constant dense<0.000000e+00> : vector<8xf32>
    %168 = vector.multi_reduction <add>, %167, %cst_89 [1] : vector<8x8xf32> to vector<8xf32>
    %169 = vector.shape_cast %168 : vector<8xf32> to vector<8x1xf32>
    %170 = vector.broadcast %169 : vector<8x1xf32> to vector<8x8xf32>
    %171 = arith.divf %167, %170 : vector<8x8xf32>
    %172 = vector.extract_strided_slice %102 {offsets = [0, 32], sizes = [8, 32], strides = [1, 1]} : vector<8x96xf32> to vector<8x32xf32>
    %cst_90 = arith.constant dense<0.000000e+00> : vector<8x32xf32>
    %173 = tpu.matmul %171, %172, %cst_90 {dimension_numbers = #tpu.dot_dimension_numbers<[1], [0], [0], [1], [0, 0, 1, 1], [], []>} : vector<8x8xf32>, vector<8x32xf32>, vector<8x32xf32> -> vector<8x32xf32>
    %174 = vector.extract_strided_slice %96 {offsets = [32, 0], sizes = [32, 32], strides = [1, 1]} : vector<96x32xf32> to vector<32x32xf32>
    %cst_91 = arith.constant dense<0.000000e+00> : vector<8x32xf32>
    %175 = tpu.matmul %173, %174, %cst_91 {dimension_numbers = #tpu.dot_dimension_numbers<[1], [0], [0], [1], [0, 0, 1, 1], [], []>} : vector<8x32xf32>, vector<32x32xf32>, vector<8x32xf32> -> vector<8x32xf32>
    %176 = arith.addf %142, %175 : vector<8x32xf32>
    %177 = vector.broadcast %97 : vector<1x32xf32> to vector<8x32xf32>
    %178 = arith.addf %176, %177 : vector<8x32xf32>
    %cst_92 = arith.constant 0.000000e+00 : f32
    %179 = vector.broadcast %cst_92 : f32 to vector<8x32xf32>
    %180 = arith.cmpf ogt, %178, %179 : vector<8x32xf32>
    %cst_93 = arith.constant 0.00999999977 : f32
    %181 = vector.broadcast %cst_93 : f32 to vector<8x32xf32>
    %182 = arith.mulf %181, %178 : vector<8x32xf32>
    %183 = arith.select %180, %178, %182 : vector<8x32xi1>, vector<8x32xf32>
    %c0_94 = arith.constant 0 : index
    %c0_95 = arith.constant 0 : index
    %184 = vector.load %arg16[%c0_94, %c0_95] : memref<96x96xf32, #tpu.memory_space<vmem>>, vector<96x96xf32>
    %c0_96 = arith.constant 0 : index
    %c0_97 = arith.constant 0 : index
    %185 = vector.load %arg17[%c0_96, %c0_97] : memref<96x8xf32, #tpu.memory_space<vmem>>, vector<96x8xf32>
    %c0_98 = arith.constant 0 : index
    %c0_99 = arith.constant 0 : index
    %186 = vector.load %arg18[%c0_98, %c0_99] : memref<8x4xf32, #tpu.memory_space<vmem>>, vector<8x4xf32>
    %c0_100 = arith.constant 0 : index
    %c0_101 = arith.constant 0 : index
    %187 = vector.load %arg19[%c0_100, %c0_101] : memref<96x32xf32, #tpu.memory_space<vmem>>, vector<96x32xf32>
    %c0_102 = arith.constant 0 : index
    %c0_103 = arith.constant 0 : index
    %188 = vector.load %arg20[%c0_102, %c0_103] : memref<1x32xf32, #tpu.memory_space<vmem>>, vector<1x32xf32>
    %189 = vector.extract_strided_slice %184 {offsets = [0, 0], sizes = [32, 96], strides = [1, 1]} : vector<96x96xf32> to vector<32x96xf32>
    %cst_104 = arith.constant dense<0.000000e+00> : vector<8x96xf32>
    %190 = tpu.matmul %4, %189, %cst_104 {dimension_numbers = #tpu.dot_dimension_numbers<[1], [0], [0], [1], [0, 0, 1, 1], [], []>} : vector<8x32xf32>, vector<32x96xf32>, vector<8x96xf32> -> vector<8x96xf32>
    %191 = vector.extract_strided_slice %184 {offsets = [32, 0], sizes = [32, 96], strides = [1, 1]} : vector<96x96xf32> to vector<32x96xf32>
    %cst_105 = arith.constant dense<0.000000e+00> : vector<8x96xf32>
    %192 = tpu.matmul %92, %191, %cst_105 {dimension_numbers = #tpu.dot_dimension_numbers<[1], [0], [0], [1], [0, 0, 1, 1], [], []>} : vector<8x32xf32>, vector<32x96xf32>, vector<8x96xf32> -> vector<8x96xf32>
    %193 = arith.addf %190, %192 : vector<8x96xf32>
    %194 = vector.extract_strided_slice %184 {offsets = [64, 0], sizes = [32, 96], strides = [1, 1]} : vector<96x96xf32> to vector<32x96xf32>
    %cst_106 = arith.constant dense<0.000000e+00> : vector<8x96xf32>
    %195 = tpu.matmul %183, %194, %cst_106 {dimension_numbers = #tpu.dot_dimension_numbers<[1], [0], [0], [1], [0, 0, 1, 1], [], []>} : vector<8x32xf32>, vector<32x96xf32>, vector<8x96xf32> -> vector<8x96xf32>
    %196 = arith.addf %193, %195 : vector<8x96xf32>
    %cst_107 = arith.constant dense<0.000000e+00> : vector<8x8xf32>
    %197 = tpu.matmul %196, %185, %cst_107 {dimension_numbers = #tpu.dot_dimension_numbers<[1], [0], [0], [1], [0, 0, 1, 1], [], []>} : vector<8x96xf32>, vector<96x8xf32>, vector<8x8xf32> -> vector<8x8xf32>
    %cst_108 = arith.constant dense<0.000000e+00> : vector<8x4xf32>
    %198 = tpu.matmul %197, %186, %cst_108 {dimension_numbers = #tpu.dot_dimension_numbers<[1], [0], [0], [1], [0, 0, 1, 1], [], []>} : vector<8x8xf32>, vector<8x4xf32>, vector<8x4xf32> -> vector<8x4xf32>
    %cst_109 = arith.constant dense<0.000000e+00> : vector<64x4xf32>
    %199 = tpu.matmul %2, %198, %cst_109 {dimension_numbers = #tpu.dot_dimension_numbers<[1], [0], [0], [1], [0, 0, 1, 1], [], []>} : vector<64x8xf32>, vector<8x4xf32>, vector<64x4xf32> -> vector<64x4xf32>
    %200 = vector.extract_strided_slice %196 {offsets = [0, 64], sizes = [8, 32], strides = [1, 1]} : vector<8x96xf32> to vector<8x32xf32>
    %201 = vector.extract_strided_slice %187 {offsets = [64, 0], sizes = [32, 32], strides = [1, 1]} : vector<96x32xf32> to vector<32x32xf32>
    %cst_110 = arith.constant dense<0.000000e+00> : vector<8x32xf32>
    %202 = tpu.matmul %200, %201, %cst_110 {dimension_numbers = #tpu.dot_dimension_numbers<[1], [0], [0], [1], [0, 0, 1, 1], [], []>} : vector<8x32xf32>, vector<32x32xf32>, vector<8x32xf32> -> vector<8x32xf32>
    %203 = vector.extract_strided_slice %199 {offsets = [0, 0], sizes = [64, 1], strides = [1, 1]} : vector<64x4xf32> to vector<64x1xf32>
    %204 = vector.broadcast %203 : vector<64x1xf32> to vector<64x8xf32>
    %205 = arith.mulf %3, %204 : vector<64x8xf32>
    %206 = vector.extract_strided_slice %199 {offsets = [0, 2], sizes = [64, 1], strides = [1, 1]} : vector<64x4xf32> to vector<64x1xf32>
    %207 = vector.broadcast %206 : vector<64x1xf32> to vector<64x8xf32>
    %208 = arith.mulf %3, %207 : vector<64x8xf32>
    %cst_111 = arith.constant dense<0.000000e+00> : vector<8x8xf32>
    %209 = tpu.matmul %0, %205, %cst_111 {dimension_numbers = #tpu.dot_dimension_numbers<[1], [0], [0], [1], [0, 0, 1, 1], [], []>} : vector<8x64xf32>, vector<64x8xf32>, vector<8x8xf32> -> vector<8x8xf32>
    %cst_112 = arith.constant dense<0.000000e+00> : vector<8x8xf32>
    %210 = tpu.matmul %1, %208, %cst_112 {dimension_numbers = #tpu.dot_dimension_numbers<[1], [0], [0], [1], [0, 0, 1, 1], [], []>} : vector<8x64xf32>, vector<64x8xf32>, vector<8x8xf32> -> vector<8x8xf32>
    %211 = arith.addf %209, %210 : vector<8x8xf32>
    %cst_113 = arith.constant 0.000000e+00 : f32
    %212 = vector.broadcast %cst_113 : f32 to vector<8x8xf32>
    %213 = arith.cmpf ogt, %211, %212 : vector<8x8xf32>
    %cst_114 = arith.constant 0.00999999977 : f32
    %214 = vector.broadcast %cst_114 : f32 to vector<8x8xf32>
    %215 = arith.mulf %214, %211 : vector<8x8xf32>
    %216 = arith.select %213, %211, %215 : vector<8x8xi1>, vector<8x8xf32>
    %c0_115 = arith.constant 0 : index
    %c0_116 = arith.constant 0 : index
    %c0_117 = arith.constant 0 : index
    %217 = vector.load %arg1[%c0_115, %c0_116, %c0_117] : memref<2x8x8xf32, #tpu.memory_space<vmem>>, vector<1x8x8xf32>
    %218 = vector.shape_cast %217 : vector<1x8x8xf32> to vector<8x8xf32>
    %cst_118 = arith.constant 0.000000e+00 : f32
    %219 = vector.broadcast %cst_118 : f32 to vector<8x8xf32>
    %220 = arith.cmpf ogt, %218, %219 : vector<8x8xf32>
    %cst_119 = arith.constant -9.000000e+15 : f32
    %221 = vector.broadcast %cst_119 : f32 to vector<8x8xf32>
    %222 = arith.select %220, %216, %221 : vector<8x8xi1>, vector<8x8xf32>
    %cst_120 = arith.constant dense<0xFF800000> : vector<8xf32>
    %223 = vector.multi_reduction <maximumf>, %222, %cst_120 [1] : vector<8x8xf32> to vector<8xf32>
    %224 = vector.shape_cast %223 : vector<8xf32> to vector<8x1xf32>
    %225 = vector.broadcast %224 : vector<8x1xf32> to vector<8x8xf32>
    %226 = arith.subf %222, %225 : vector<8x8xf32>
    %227 = math.exp %226 : vector<8x8xf32>
    %cst_121 = arith.constant dense<0.000000e+00> : vector<8xf32>
    %228 = vector.multi_reduction <add>, %227, %cst_121 [1] : vector<8x8xf32> to vector<8xf32>
    %229 = vector.shape_cast %228 : vector<8xf32> to vector<8x1xf32>
    %230 = vector.broadcast %229 : vector<8x1xf32> to vector<8x8xf32>
    %231 = arith.divf %227, %230 : vector<8x8xf32>
    %232 = vector.extract_strided_slice %196 {offsets = [0, 0], sizes = [8, 32], strides = [1, 1]} : vector<8x96xf32> to vector<8x32xf32>
    %cst_122 = arith.constant dense<0.000000e+00> : vector<8x32xf32>
    %233 = tpu.matmul %231, %232, %cst_122 {dimension_numbers = #tpu.dot_dimension_numbers<[1], [0], [0], [1], [0, 0, 1, 1], [], []>} : vector<8x8xf32>, vector<8x32xf32>, vector<8x32xf32> -> vector<8x32xf32>
    %234 = vector.extract_strided_slice %187 {offsets = [0, 0], sizes = [32, 32], strides = [1, 1]} : vector<96x32xf32> to vector<32x32xf32>
    %cst_123 = arith.constant dense<0.000000e+00> : vector<8x32xf32>
    %235 = tpu.matmul %233, %234, %cst_123 {dimension_numbers = #tpu.dot_dimension_numbers<[1], [0], [0], [1], [0, 0, 1, 1], [], []>} : vector<8x32xf32>, vector<32x32xf32>, vector<8x32xf32> -> vector<8x32xf32>
    %236 = arith.addf %202, %235 : vector<8x32xf32>
    %237 = vector.extract_strided_slice %199 {offsets = [0, 1], sizes = [64, 1], strides = [1, 1]} : vector<64x4xf32> to vector<64x1xf32>
    %238 = vector.broadcast %237 : vector<64x1xf32> to vector<64x8xf32>
    %239 = arith.mulf %3, %238 : vector<64x8xf32>
    %240 = vector.extract_strided_slice %199 {offsets = [0, 3], sizes = [64, 1], strides = [1, 1]} : vector<64x4xf32> to vector<64x1xf32>
    %241 = vector.broadcast %240 : vector<64x1xf32> to vector<64x8xf32>
    %242 = arith.mulf %3, %241 : vector<64x8xf32>
    %cst_124 = arith.constant dense<0.000000e+00> : vector<8x8xf32>
    %243 = tpu.matmul %0, %239, %cst_124 {dimension_numbers = #tpu.dot_dimension_numbers<[1], [0], [0], [1], [0, 0, 1, 1], [], []>} : vector<8x64xf32>, vector<64x8xf32>, vector<8x8xf32> -> vector<8x8xf32>
    %cst_125 = arith.constant dense<0.000000e+00> : vector<8x8xf32>
    %244 = tpu.matmul %1, %242, %cst_125 {dimension_numbers = #tpu.dot_dimension_numbers<[1], [0], [0], [1], [0, 0, 1, 1], [], []>} : vector<8x64xf32>, vector<64x8xf32>, vector<8x8xf32> -> vector<8x8xf32>
    %245 = arith.addf %243, %244 : vector<8x8xf32>
    %cst_126 = arith.constant 0.000000e+00 : f32
    %246 = vector.broadcast %cst_126 : f32 to vector<8x8xf32>
    %247 = arith.cmpf ogt, %245, %246 : vector<8x8xf32>
    %cst_127 = arith.constant 0.00999999977 : f32
    %248 = vector.broadcast %cst_127 : f32 to vector<8x8xf32>
    %249 = arith.mulf %248, %245 : vector<8x8xf32>
    %250 = arith.select %247, %245, %249 : vector<8x8xi1>, vector<8x8xf32>
    %c1_128 = arith.constant 1 : index
    %c0_129 = arith.constant 0 : index
    %c0_130 = arith.constant 0 : index
    %251 = vector.load %arg1[%c1_128, %c0_129, %c0_130] : memref<2x8x8xf32, #tpu.memory_space<vmem>>, vector<1x8x8xf32>
    %252 = vector.shape_cast %251 : vector<1x8x8xf32> to vector<8x8xf32>
    %cst_131 = arith.constant 0.000000e+00 : f32
    %253 = vector.broadcast %cst_131 : f32 to vector<8x8xf32>
    %254 = arith.cmpf ogt, %252, %253 : vector<8x8xf32>
    %cst_132 = arith.constant -9.000000e+15 : f32
    %255 = vector.broadcast %cst_132 : f32 to vector<8x8xf32>
    %256 = arith.select %254, %250, %255 : vector<8x8xi1>, vector<8x8xf32>
    %cst_133 = arith.constant dense<0xFF800000> : vector<8xf32>
    %257 = vector.multi_reduction <maximumf>, %256, %cst_133 [1] : vector<8x8xf32> to vector<8xf32>
    %258 = vector.shape_cast %257 : vector<8xf32> to vector<8x1xf32>
    %259 = vector.broadcast %258 : vector<8x1xf32> to vector<8x8xf32>
    %260 = arith.subf %256, %259 : vector<8x8xf32>
    %261 = math.exp %260 : vector<8x8xf32>
    %cst_134 = arith.constant dense<0.000000e+00> : vector<8xf32>
    %262 = vector.multi_reduction <add>, %261, %cst_134 [1] : vector<8x8xf32> to vector<8xf32>
    %263 = vector.shape_cast %262 : vector<8xf32> to vector<8x1xf32>
    %264 = vector.broadcast %263 : vector<8x1xf32> to vector<8x8xf32>
    %265 = arith.divf %261, %264 : vector<8x8xf32>
    %266 = vector.extract_strided_slice %196 {offsets = [0, 32], sizes = [8, 32], strides = [1, 1]} : vector<8x96xf32> to vector<8x32xf32>
    %cst_135 = arith.constant dense<0.000000e+00> : vector<8x32xf32>
    %267 = tpu.matmul %265, %266, %cst_135 {dimension_numbers = #tpu.dot_dimension_numbers<[1], [0], [0], [1], [0, 0, 1, 1], [], []>} : vector<8x8xf32>, vector<8x32xf32>, vector<8x32xf32> -> vector<8x32xf32>
    %268 = vector.extract_strided_slice %187 {offsets = [32, 0], sizes = [32, 32], strides = [1, 1]} : vector<96x32xf32> to vector<32x32xf32>
    %cst_136 = arith.constant dense<0.000000e+00> : vector<8x32xf32>
    %269 = tpu.matmul %267, %268, %cst_136 {dimension_numbers = #tpu.dot_dimension_numbers<[1], [0], [0], [1], [0, 0, 1, 1], [], []>} : vector<8x32xf32>, vector<32x32xf32>, vector<8x32xf32> -> vector<8x32xf32>
    %270 = arith.addf %236, %269 : vector<8x32xf32>
    %271 = vector.broadcast %188 : vector<1x32xf32> to vector<8x32xf32>
    %272 = arith.addf %270, %271 : vector<8x32xf32>
    %cst_137 = arith.constant 0.000000e+00 : f32
    %273 = vector.broadcast %cst_137 : f32 to vector<8x32xf32>
    %274 = arith.cmpf ogt, %272, %273 : vector<8x32xf32>
    %cst_138 = arith.constant 0.00999999977 : f32
    %275 = vector.broadcast %cst_138 : f32 to vector<8x32xf32>
    %276 = arith.mulf %275, %272 : vector<8x32xf32>
    %277 = arith.select %274, %272, %276 : vector<8x32xi1>, vector<8x32xf32>
    %c0_139 = arith.constant 0 : index
    %c0_140 = arith.constant 0 : index
    %278 = vector.load %arg21[%c0_139, %c0_140] : memref<8x32xf32, #tpu.memory_space<vmem>>, vector<8x32xf32>
    tpu.vector_store %arg21[%c0_139, %c0_140], %277 {strides = array<i32>} : memref<8x32xf32, #tpu.memory_space<vmem>>, vector<8x32xf32>,
    return
  }
}

</mosaic_0001>

<llo_original>
// kernel: _lambda_.1
$region0: #{_lambda_.1}
  #allocation0 [shape = 'u32[]', space=smem, size = 0x4, offset = 0x4, fixed_abs, tag = 'smem constant byte address 0x4 - core index']
  #allocation1 [shape = 'u32[72,128]{1,0:T(1,128)}', space=vmem, size = 0x9000, scoped, tag = 'internal scratch']
  %s0 = inlined_call_operand.vmem [shape: f32[8,32], index: 0, kind: input, shape index: {}]
  %s1 = inlined_call_operand.vmem [shape: f32[2,8,8], index: 1, kind: input, shape index: {}]
  %s2 = inlined_call_operand.vmem [shape: f32[8,64], index: 2, kind: input, shape index: {}]
  %s3 = inlined_call_operand.hbm [shape: f32[8,64], index: 3, kind: input, shape index: {}]
  %s4 = inlined_call_operand.hbm [shape: f32[64,8], index: 4, kind: input, shape index: {}]
  %s5 = inlined_call_operand.hbm [shape: f32[64,8], index: 5, kind: input, shape index: {}]
  %s6 = inlined_call_operand.vmem [shape: f32[32,96], index: 6, kind: input, shape index: {}]
  %s7 = inlined_call_operand.hbm [shape: f32[96,8], index: 7, kind: input, shape index: {}]
  %s8 = inlined_call_operand.hbm [shape: f32[8,4], index: 8, kind: input, shape index: {}]
  %s9 = inlined_call_operand.hbm [shape: f32[96,32], index: 9, kind: input, shape index: {}]
  %s10 = inlined_call_operand.hbm [shape: f32[1,32], index: 10, kind: input, shape index: {}]
  %s11 = inlined_call_operand.hbm [shape: f32[64,96], index: 11, kind: input, shape index: {}]
  %s12 = inlined_call_operand.hbm [shape: f32[96,8], index: 12, kind: input, shape index: {}]
  %s13 = inlined_call_operand.hbm [shape: f32[8,4], index: 13, kind: input, shape index: {}]
  %s14 = inlined_call_operand.hbm [shape: f32[96,32], index: 14, kind: input, shape index: {}]
  %s15 = inlined_call_operand.hbm [shape: f32[1,32], index: 15, kind: input, shape index: {}]
  %s16 = inlined_call_operand.hbm [shape: f32[96,96], index: 16, kind: input, shape index: {}]
  %s17 = inlined_call_operand.hbm [shape: f32[96,8], index: 17, kind: input, shape index: {}]
  %s18 = inlined_call_operand.hbm [shape: f32[8,4], index: 18, kind: input, shape index: {}]
  %s19 = inlined_call_operand.hbm [shape: f32[96,32], index: 19, kind: input, shape index: {}]
  %s20 = inlined_call_operand.hbm [shape: f32[1,32], index: 20, kind: input, shape index: {}]
  %s21 = inlined_call_operand.hbm [shape: f32[8,32], index: 21, kind: output, shape index: {}]
  %s22 = sld [smem:[#allocation0]]
  $region162: #{_lambda_.1} parent=0
    _
  %s24 = ssub.s32 1, %s22
  %s25 = scalar_select 0, %s24, %s22
  $region1: #{_lambda_.1} parent=0
    #allocation2 [shape = 'u8[4096]{0}', space=vmem, size = 0x1000, scoped, tag = 'input window, operand 3, single buffered']
    #allocation3 [shape = 's32[1]{0}', space=sflag, size = 0x4, scoped, tag = 'scoped memory for _lambda_.1']
    #allocation4 [shape = 's32[1]{0}', space=sflag, size = 0x4, scoped, tag = 'scoped memory for _lambda_.1']
    #allocation5 [shape = 'u8[32768]{0}', space=vmem, size = 0x8000, scoped, tag = 'input window, operand 4, single buffered']
    #allocation6 [shape = 's32[1]{0}', space=sflag, size = 0x4, scoped, tag = 'scoped memory for _lambda_.1']
    #allocation7 [shape = 'u8[32768]{0}', space=vmem, size = 0x8000, scoped, tag = 'input window, operand 5, single buffered']
    #allocation8 [shape = 'u8[49152]{0}', space=vmem, size = 0xc000, scoped, tag = 'input window, operand 7, single buffered']
    #allocation9 [shape = 's32[1]{0}', space=sflag, size = 0x4, scoped, tag = 'scoped memory for _lambda_.1']
    #allocation10 [shape = 'u8[4096]{0}', space=vmem, size = 0x1000, scoped, tag = 'input window, operand 8, single buffered']
    #allocation11 [shape = 'u8[49152]{0}', space=vmem, size = 0xc000, scoped, tag = 'input window, operand 9, single buffered']
    #allocation12 [shape = 's32[1]{0}', space=sflag, size = 0x4, scoped, tag = 'scoped memory for _lambda_.1']
    #allocation13 [shape = 'u8[512]{0}', space=vmem, size = 0x400, scoped, tag = 'input window, operand 10, single buffered']
    #allocation14 [shape = 'u8[32768]{0}', space=vmem, size = 0x8000, scoped, tag = 'input window, operand 11, single buffered']
    #allocation15 [shape = 's32[1]{0}', space=sflag, size = 0x4, scoped, tag = 'scoped memory for _lambda_.1']
    #allocation16 [shape = 'u8[49152]{0}', space=vmem, size = 0xc000, scoped, tag = 'input window, operand 12, single buffered']
    #allocation17 [shape = 'u8[4096]{0}', space=vmem, size = 0x1000, scoped, tag = 'input window, operand 13, single buffered']
    #allocation18 [shape = 's32[1]{0}', space=sflag, size = 0x4, scoped, tag = 'scoped memory for _lambda_.1']
    #allocation19 [shape = 'u8[49152]{0}', space=vmem, size = 0xc000, scoped, tag = 'input window, operand 14, single buffered']
    #allocation20 [shape = 'u8[512]{0}', space=vmem, size = 0x400, scoped, tag = 'input window, operand 15, single buffered']
    #allocation21 [shape = 's32[1]{0}', space=sflag, size = 0x4, scoped, tag = 'scoped memory for _lambda_.1']
    #allocation22 [shape = 'u8[49152]{0}', space=vmem, size = 0xc000, scoped, tag = 'input window, operand 16, single buffered']
    #allocation23 [shape = 'u8[49152]{0}', space=vmem, size = 0xc000, scoped, tag = 'input window, operand 17, single buffered']
    #allocation24 [shape = 's32[1]{0}', space=sflag, size = 0x4, scoped, tag = 'scoped memory for _lambda_.1']
    #allocation25 [shape = 'u8[4096]{0}', space=vmem, size = 0x1000, scoped, tag = 'input window, operand 18, single buffered']
    #allocation26 [shape = 'u8[49152]{0}', space=vmem, size = 0xc000, scoped, tag = 'input window, operand 19, single buffered']
    #allocation27 [shape = 's32[1]{0}', space=sflag, size = 0x4, scoped, tag = 'scoped memory for _lambda_.1']
    #allocation28 [shape = 'u8[512]{0}', space=vmem, size = 0x400, scoped, tag = 'input window, operand 20, single buffered']
    #allocation29 [shape = 'u8[4096]{0}', space=vmem, size = 0x1000, scoped, tag = 'output window, operand 0, single buffered']
    %26 = vsyncpa [#allocation3], 0
    %27 = vsyncpa [#allocation6], 0
    %28 = vsyncpa [#allocation9], 0
    %29 = vsyncpa [#allocation12], 0
    %30 = vsyncpa [#allocation15], 0
    %31 = vsyncpa [#allocation18], 0
    %32 = vsyncpa [#allocation21], 0
    %33 = vsyncpa [#allocation24], 0
    %34 = vsyncpa [#allocation27], 0
    %35 = vsyncpa [#allocation4], 0
    // Predicated region
    $region2: #{_lambda_.1} parent=1 // pred_check
      _
    $region3: #{_lambda_.1} parent=1 // pred_check_branch
      %37 = sbr.rel (0) target = $region5
    $region4: #{_lambda_.1} parent=1 // pred_region
      _
    $region5: #{_lambda_.1} parent=1 // pred_fallthru
      _
    // Predicated region
    $region6: #{_lambda_.1} parent=1 // pred_check
      _
    $region7: #{_lambda_.1} parent=1 // pred_check_branch
      %39 = sbr.rel (0) target = $region9
    $region8: #{_lambda_.1} parent=1 // pred_region
      _
    $region9: #{_lambda_.1} parent=1 // pred_fallthru
      _
    // Predicated region
    $region10: #{_lambda_.1} parent=1 // pred_check
      _
    $region11: #{_lambda_.1} parent=1 // pred_check_branch
      %41 = sbr.rel (0) target = $region13
    $region12: #{_lambda_.1} parent=1 // pred_region
      _
    $region13: #{_lambda_.1} parent=1 // pred_fallthru
      _
    // Predicated region
    $region14: #{_lambda_.1} parent=1 // pred_check
      _
    $region15: #{_lambda_.1} parent=1 // pred_check_branch
      %43 = sbr.rel (0) target = $region17
    $region16: #{_lambda_.1} parent=1 // pred_region
      %45 = vsyncadd [#allocation3], 0
      %s47 = sshll.u32 %s3, 4
      %s48 = int_to_ptr.hbm [resolvable:$true] %s47
      %s49 = sshll.u32 [#allocation2], 4
      %s50 = int_to_ptr.vmem [resolvable:$true] %s49
      %52 = dma.hbm_to_vmem [thread:$0]  %s48, 128, %s50, [#allocation3]
    $region17: #{_lambda_.1} parent=1 // pred_fallthru
      _
    // Predicated region
    $region18: #{_lambda_.1} parent=1 // pred_check
      _
    $region19: #{_lambda_.1} parent=1 // pred_check_branch
      %54 = sbr.rel (0) target = $region21
    $region20: #{_lambda_.1} parent=1 // pred_region
      %56 = vsyncadd [#allocation6], 0
      %s57 = sshll.u32 %s4, 4
      %s58 = int_to_ptr.hbm [resolvable:$true] %s57
      %s59 = sshll.u32 [#allocation5], 4
      %s60 = int_to_ptr.vmem [resolvable:$true] %s59
      %65 = dma.hbm_to_vmem [thread:$0]  %s58, 1024, %s60, [#allocation6], 128, 128, 8
    $region21: #{_lambda_.1} parent=1 // pred_fallthru
      _
    // Predicated region
    $region22: #{_lambda_.1} parent=1 // pred_check
      _
    $region23: #{_lambda_.1} parent=1 // pred_check_branch
      %67 = sbr.rel (0) target = $region25
    $region24: #{_lambda_.1} parent=1 // pred_region
      %69 = vsyncadd [#allocation6], 0
      %s70 = sshll.u32 %s5, 4
      %s71 = int_to_ptr.hbm [resolvable:$true] %s70
      %s72 = sshll.u32 [#allocation7], 4
      %s73 = int_to_ptr.vmem [resolvable:$true] %s72
      %78 = dma.hbm_to_vmem [thread:$0]  %s71, 1024, %s73, [#allocation6], 128, 128, 8
    $region25: #{_lambda_.1} parent=1 // pred_fallthru
      _
    // Predicated region
    $region26: #{_lambda_.1} parent=1 // pred_check
      _
    $region27: #{_lambda_.1} parent=1 // pred_check_branch
      %80 = sbr.rel (0) target = $region29
    $region28: #{_lambda_.1} parent=1 // pred_region
      _
    $region29: #{_lambda_.1} parent=1 // pred_fallthru
      _
    // Predicated region
    $region30: #{_lambda_.1} parent=1 // pred_check
      _
    $region31: #{_lambda_.1} parent=1 // pred_check_branch
      %82 = sbr.rel (0) target = $region33
    $region32: #{_lambda_.1} parent=1 // pred_region
      %84 = vsyncadd [#allocation9], 0
      %s85 = sshll.u32 %s7, 4
      %s86 = int_to_ptr.hbm [resolvable:$true] %s85
      %s87 = sshll.u32 [#allocation8], 4
      %s88 = int_to_ptr.vmem [resolvable:$true] %s87
      %93 = dma.hbm_to_vmem [thread:$0]  %s86, 1536, %s88, [#allocation9], 128, 128, 8
    $region33: #{_lambda_.1} parent=1 // pred_fallthru
      _
    // Predicated region
    $region34: #{_lambda_.1} parent=1 // pred_check
      _
    $region35: #{_lambda_.1} parent=1 // pred_check_branch
      %95 = sbr.rel (0) target = $region37
    $region36: #{_lambda_.1} parent=1 // pred_region
      %97 = vsyncadd [#allocation9], 0
      %s99 = sshll.u32 %s8, 4
      %s100 = int_to_ptr.hbm [resolvable:$true] %s99
      %s101 = sshll.u32 [#allocation10], 4
      %s102 = int_to_ptr.vmem [resolvable:$true] %s101
      %104 = dma.hbm_to_vmem [thread:$0]  %s100, 128, %s102, [#allocation9]
    $region37: #{_lambda_.1} parent=1 // pred_fallthru
      _
    // Predicated region
    $region38: #{_lambda_.1} parent=1 // pred_check
      _
    $region39: #{_lambda_.1} parent=1 // pred_check_branch
      %106 = sbr.rel (0) target = $region41
    $region40: #{_lambda_.1} parent=1 // pred_region
      %108 = vsyncadd [#allocation12], 0
      %s109 = sshll.u32 %s9, 4
      %s110 = int_to_ptr.hbm [resolvable:$true] %s109
      %s111 = sshll.u32 [#allocation11], 4
      %s112 = int_to_ptr.vmem [resolvable:$true] %s111
      %117 = dma.hbm_to_vmem [thread:$0]  %s110, 1536, %s112, [#allocation12], 128, 128, 8
    $region41: #{_lambda_.1} parent=1 // pred_fallthru
      _
    // Predicated region
    $region42: #{_lambda_.1} parent=1 // pred_check
      _
    $region43: #{_lambda_.1} parent=1 // pred_check_branch
      %119 = sbr.rel (0) target = $region45
    $region44: #{_lambda_.1} parent=1 // pred_region
      %121 = vsyncadd [#allocation12], 0
      %s123 = sshll.u32 %s10, 4
      %s124 = int_to_ptr.hbm [resolvable:$true] %s123
      %s125 = sshll.u32 [#allocation13], 4
      %s126 = int_to_ptr.vmem [resolvable:$true] %s125
      %128 = dma.hbm_to_vmem [thread:$0]  %s124, 16, %s126, [#allocation12]
    $region45: #{_lambda_.1} parent=1 // pred_fallthru
      _
    // Predicated region
    $region46: #{_lambda_.1} parent=1 // pred_check
      _
    $region47: #{_lambda_.1} parent=1 // pred_check_branch
      %130 = sbr.rel (0) target = $region49
    $region48: #{_lambda_.1} parent=1 // pred_region
      %132 = vsyncadd [#allocation15], 0
      %s133 = sshll.u32 %s11, 4
      %s134 = int_to_ptr.hbm [resolvable:$true] %s133
      %s135 = sshll.u32 [#allocation14], 4
      %s136 = int_to_ptr.vmem [resolvable:$true] %s135
      %141 = dma.hbm_to_vmem [thread:$0]  %s134, 1024, %s136, [#allocation15], 128, 128, 8
    $region49: #{_lambda_.1} parent=1 // pred_fallthru
      _
    // Predicated region
    $region50: #{_lambda_.1} parent=1 // pred_check
      _
    $region51: #{_lambda_.1} parent=1 // pred_check_branch
      %143 = sbr.rel (0) target = $region53
    $region52: #{_lambda_.1} parent=1 // pred_region
      %145 = vsyncadd [#allocation15], 0
      %s146 = sshll.u32 %s12, 4
      %s147 = int_to_ptr.hbm [resolvable:$true] %s146
      %s148 = sshll.u32 [#allocation16], 4
      %s149 = int_to_ptr.vmem [resolvable:$true] %s148
      %154 = dma.hbm_to_vmem [thread:$0]  %s147, 1536, %s149, [#allocation15], 128, 128, 8
    $region53: #{_lambda_.1} parent=1 // pred_fallthru
      _
    // Predicated region
    $region54: #{_lambda_.1} parent=1 // pred_check
      _
    $region55: #{_lambda_.1} parent=1 // pred_check_branch
      %156 = sbr.rel (0) target = $region57
    $region56: #{_lambda_.1} parent=1 // pred_region
      %158 = vsyncadd [#allocation18], 0
      %s160 = sshll.u32 %s13, 4
      %s161 = int_to_ptr.hbm [resolvable:$true] %s160
      %s162 = sshll.u32 [#allocation17], 4
      %s163 = int_to_ptr.vmem [resolvable:$true] %s162
      %165 = dma.hbm_to_vmem [thread:$0]  %s161, 128, %s163, [#allocation18]
    $region57: #{_lambda_.1} parent=1 // pred_fallthru
      _
    // Predicated region
    $region58: #{_lambda_.1} parent=1 // pred_check
      _
    $region59: #{_lambda_.1} parent=1 // pred_check_branch
      %167 = sbr.rel (0) target = $region61
    $region60: #{_lambda_.1} parent=1 // pred_region
      %169 = vsyncadd [#allocation18], 0
      %s170 = sshll.u32 %s14, 4
      %s171 = int_to_ptr.hbm [resolvable:$true] %s170
      %s172 = sshll.u32 [#allocation19], 4
      %s173 = int_to_ptr.vmem [resolvable:$true] %s172
      %178 = dma.hbm_to_vmem [thread:$0]  %s171, 1536, %s173, [#allocation18], 128, 128, 8
    $region61: #{_lambda_.1} parent=1 // pred_fallthru
      _
    // Predicated region
    $region62: #{_lambda_.1} parent=1 // pred_check
      _
    $region63: #{_lambda_.1} parent=1 // pred_check_branch
      %180 = sbr.rel (0) target = $region65
    $region64: #{_lambda_.1} parent=1 // pred_region
      %182 = vsyncadd [#allocation21], 0
      %s184 = sshll.u32 %s15, 4
      %s185 = int_to_ptr.hbm [resolvable:$true] %s184
      %s186 = sshll.u32 [#allocation20], 4
      %s187 = int_to_ptr.vmem [resolvable:$true] %s186
      %189 = dma.hbm_to_vmem [thread:$0]  %s185, 16, %s187, [#allocation21]
    $region65: #{_lambda_.1} parent=1 // pred_fallthru
      _
    // Predicated region
    $region66: #{_lambda_.1} parent=1 // pred_check
      _
    $region67: #{_lambda_.1} parent=1 // pred_check_branch
      %191 = sbr.rel (0) target = $region69
    $region68: #{_lambda_.1} parent=1 // pred_region
      %193 = vsyncadd [#allocation21], 0
      %s194 = sshll.u32 %s16, 4
      %s195 = int_to_ptr.hbm [resolvable:$true] %s194
      %s196 = sshll.u32 [#allocation22], 4
      %s197 = int_to_ptr.vmem [resolvable:$true] %s196
      %202 = dma.hbm_to_vmem [thread:$0]  %s195, 1536, %s197, [#allocation21], 128, 128, 8
    $region69: #{_lambda_.1} parent=1 // pred_fallthru
      _
    // Predicated region
    $region70: #{_lambda_.1} parent=1 // pred_check
      _
    $region71: #{_lambda_.1} parent=1 // pred_check_branch
      %204 = sbr.rel (0) target = $region73
    $region72: #{_lambda_.1} parent=1 // pred_region
      %206 = vsyncadd [#allocation24], 0
      %s207 = sshll.u32 %s17, 4
      %s208 = int_to_ptr.hbm [resolvable:$true] %s207
      %s209 = sshll.u32 [#allocation23], 4
      %s210 = int_to_ptr.vmem [resolvable:$true] %s209
      %215 = dma.hbm_to_vmem [thread:$0]  %s208, 1536, %s210, [#allocation24], 128, 128, 8
    $region73: #{_lambda_.1} parent=1 // pred_fallthru
      _
    // Predicated region
    $region74: #{_lambda_.1} parent=1 // pred_check
      _
    $region75: #{_lambda_.1} parent=1 // pred_check_branch
      %217 = sbr.rel (0) target = $region77
    $region76: #{_lambda_.1} parent=1 // pred_region
      %219 = vsyncadd [#allocation24], 0
      %s221 = sshll.u32 %s18, 4
      %s222 = int_to_ptr.hbm [resolvable:$true] %s221
      %s223 = sshll.u32 [#allocation25], 4
      %s224 = int_to_ptr.vmem [resolvable:$true] %s223
      %226 = dma.hbm_to_vmem [thread:$0]  %s222, 128, %s224, [#allocation24]
    $region77: #{_lambda_.1} parent=1 // pred_fallthru
      _
    // Predicated region
    $region78: #{_lambda_.1} parent=1 // pred_check
      _
    $region79: #{_lambda_.1} parent=1 // pred_check_branch
      %228 = sbr.rel (0) target = $region81
    $region80: #{_lambda_.1} parent=1 // pred_region
      %230 = vsyncadd [#allocation27], 0
      %s231 = sshll.u32 %s19, 4
      %s232 = int_to_ptr.hbm [resolvable:$true] %s231
      %s233 = sshll.u32 [#allocation26], 4
      %s234 = int_to_ptr.vmem [resolvable:$true] %s233
      %239 = dma.hbm_to_vmem [thread:$0]  %s232, 1536, %s234, [#allocation27], 128, 128, 8
    $region81: #{_lambda_.1} parent=1 // pred_fallthru
      _
    // Predicated region
    $region82: #{_lambda_.1} parent=1 // pred_check
      _
    $region83: #{_lambda_.1} parent=1 // pred_check_branch
      %241 = sbr.rel (0) target = $region85
    $region84: #{_lambda_.1} parent=1 // pred_region
      %243 = vsyncadd [#allocation27], 0
      %s245 = sshll.u32 %s20, 4
      %s246 = int_to_ptr.hbm [resolvable:$true] %s245
      %s247 = sshll.u32 [#allocation28], 4
      %s248 = int_to_ptr.vmem [resolvable:$true] %s247
      %250 = dma.hbm_to_vmem [thread:$0]  %s246, 16, %s248, [#allocation27]
    $region85: #{_lambda_.1} parent=1 // pred_fallthru
      _
    // Predicated region
    $region86: #{_lambda_.1} parent=1 // pred_check
      _
    $region87: #{_lambda_.1} parent=1 // pred_check_branch
      %252 = sbr.rel (0) target = $region89
    $region88: #{_lambda_.1} parent=1 // pred_region
      %254 = dma.done [#allocation3], 128
    $region89: #{_lambda_.1} parent=1 // pred_fallthru
      _
    // Predicated region
    $region90: #{_lambda_.1} parent=1 // pred_check
      _
    $region91: #{_lambda_.1} parent=1 // pred_check_branch
      %256 = sbr.rel (0) target = $region93
    $region92: #{_lambda_.1} parent=1 // pred_region
      %258 = dma.done [#allocation6], 1024
    $region93: #{_lambda_.1} parent=1 // pred_fallthru
      _
    // Predicated region
    $region94: #{_lambda_.1} parent=1 // pred_check
      _
    $region95: #{_lambda_.1} parent=1 // pred_check_branch
      %260 = sbr.rel (0) target = $region97
    $region96: #{_lambda_.1} parent=1 // pred_region
      %262 = dma.done [#allocation6], 1024
    $region97: #{_lambda_.1} parent=1 // pred_fallthru
      _
    // Predicated region
    $region98: #{_lambda_.1} parent=1 // pred_check
      _
    $region99: #{_lambda_.1} parent=1 // pred_check_branch
      %264 = sbr.rel (0) target = $region101
    $region100: #{_lambda_.1} parent=1 // pred_region
      %266 = dma.done [#allocation9], 1536
    $region101: #{_lambda_.1} parent=1 // pred_fallthru
      _
    // Predicated region
    $region102: #{_lambda_.1} parent=1 // pred_check
      _
    $region103: #{_lambda_.1} parent=1 // pred_check_branch
      %268 = sbr.rel (0) target = $region105
    $region104: #{_lambda_.1} parent=1 // pred_region
      %270 = dma.done [#allocation9], 128
    $region105: #{_lambda_.1} parent=1 // pred_fallthru
      _
    // Predicated region
    $region106: #{_lambda_.1} parent=1 // pred_check
      _
    $region107: #{_lambda_.1} parent=1 // pred_check_branch
      %272 = sbr.rel (0) target = $region109
    $region108: #{_lambda_.1} parent=1 // pred_region
      %274 = dma.done [#allocation12], 1536
    $region109: #{_lambda_.1} parent=1 // pred_fallthru
      _
    // Predicated region
    $region110: #{_lambda_.1} parent=1 // pred_check
      _
    $region111: #{_lambda_.1} parent=1 // pred_check_branch
      %276 = sbr.rel (0) target = $region113
    $region112: #{_lambda_.1} parent=1 // pred_region
      %278 = dma.done [#allocation12], 16
    $region113: #{_lambda_.1} parent=1 // pred_fallthru
      _
    // Predicated region
    $region114: #{_lambda_.1} parent=1 // pred_check
      _
    $region115: #{_lambda_.1} parent=1 // pred_check_branch
      %280 = sbr.rel (0) target = $region117
    $region116: #{_lambda_.1} parent=1 // pred_region
      %282 = dma.done [#allocation15], 1024
    $region117: #{_lambda_.1} parent=1 // pred_fallthru
      _
    // Predicated region
    $region118: #{_lambda_.1} parent=1 // pred_check
      _
    $region119: #{_lambda_.1} parent=1 // pred_check_branch
      %284 = sbr.rel (0) target = $region121
    $region120: #{_lambda_.1} parent=1 // pred_region
      %286 = dma.done [#allocation15], 1536
    $region121: #{_lambda_.1} parent=1 // pred_fallthru
      _
    // Predicated region
    $region122: #{_lambda_.1} parent=1 // pred_check
      _
    $region123: #{_lambda_.1} parent=1 // pred_check_branch
      %288 = sbr.rel (0) target = $region125
    $region124: #{_lambda_.1} parent=1 // pred_region
      %290 = dma.done [#allocation18], 128
    $region125: #{_lambda_.1} parent=1 // pred_fallthru
      _
    // Predicated region
    $region126: #{_lambda_.1} parent=1 // pred_check
      _
    $region127: #{_lambda_.1} parent=1 // pred_check_branch
      %292 = sbr.rel (0) target = $region129
    $region128: #{_lambda_.1} parent=1 // pred_region
      %294 = dma.done [#allocation18], 1536
    $region129: #{_lambda_.1} parent=1 // pred_fallthru
      _
    // Predicated region
    $region130: #{_lambda_.1} parent=1 // pred_check
      _
    $region131: #{_lambda_.1} parent=1 // pred_check_branch
      %296 = sbr.rel (0) target = $region133
    $region132: #{_lambda_.1} parent=1 // pred_region
      %298 = dma.done [#allocation21], 16
    $region133: #{_lambda_.1} parent=1 // pred_fallthru
      _
    // Predicated region
    $region134: #{_lambda_.1} parent=1 // pred_check
      _
    $region135: #{_lambda_.1} parent=1 // pred_check_branch
      %300 = sbr.rel (0) target = $region137
    $region136: #{_lambda_.1} parent=1 // pred_region
      %302 = dma.done [#allocation21], 1536
    $region137: #{_lambda_.1} parent=1 // pred_fallthru
      _
    // Predicated region
    $region138: #{_lambda_.1} parent=1 // pred_check
      _
    $region139: #{_lambda_.1} parent=1 // pred_check_branch
      %304 = sbr.rel (0) target = $region141
    $region140: #{_lambda_.1} parent=1 // pred_region
      %306 = dma.done [#allocation24], 1536
    $region141: #{_lambda_.1} parent=1 // pred_fallthru
      _
    // Predicated region
    $region142: #{_lambda_.1} parent=1 // pred_check
      _
    $region143: #{_lambda_.1} parent=1 // pred_check_branch
      %308 = sbr.rel (0) target = $region145
    $region144: #{_lambda_.1} parent=1 // pred_region
      %310 = dma.done [#allocation24], 128
    $region145: #{_lambda_.1} parent=1 // pred_fallthru
      _
    // Predicated region
    $region146: #{_lambda_.1} parent=1 // pred_check
      _
    $region147: #{_lambda_.1} parent=1 // pred_check_branch
      %312 = sbr.rel (0) target = $region149
    $region148: #{_lambda_.1} parent=1 // pred_region
      %314 = dma.done [#allocation27], 1536
    $region149: #{_lambda_.1} parent=1 // pred_fallthru
      _
    // Predicated region
    $region150: #{_lambda_.1} parent=1 // pred_check
      _
    $region151: #{_lambda_.1} parent=1 // pred_check_branch
      %316 = sbr.rel (0) target = $region153
    $region152: #{_lambda_.1} parent=1 // pred_region
      %318 = dma.done [#allocation27], 16
    $region153: #{_lambda_.1} parent=1 // pred_fallthru
      _
    %v319 = vld [vmem:[%s2] sm:$0xff]
    %v320 = vld [vmem:[#allocation2] sm:$0xff]
    %v321 = vld [vmem:[#allocation5] sm:$0xff]
    %v322 = vld [vmem:[#allocation5 + $0x8] sm:$0xff]
    %v323 = vld [vmem:[#allocation5 + $0x10] sm:$0xff]
    %v324 = vld [vmem:[#allocation5 + $0x18] sm:$0xff]
    %v325 = vld [vmem:[#allocation5 + $0x20] sm:$0xff]
    %v326 = vld [vmem:[#allocation5 + $0x28] sm:$0xff]
    %v327 = vld [vmem:[#allocation5 + $0x30] sm:$0xff]
    %v328 = vld [vmem:[#allocation5 + $0x38] sm:$0xff]
    %v329 = vld [vmem:[#allocation7] sm:$0xff]
    %v330 = vld [vmem:[#allocation7 + $0x8] sm:$0xff]
    %v331 = vld [vmem:[#allocation7 + $0x10] sm:$0xff]
    %v332 = vld [vmem:[#allocation7 + $0x18] sm:$0xff]
    %v333 = vld [vmem:[#allocation7 + $0x20] sm:$0xff]
    %v334 = vld [vmem:[#allocation7 + $0x28] sm:$0xff]
    %v335 = vld [vmem:[#allocation7 + $0x30] sm:$0xff]
    %v336 = vld [vmem:[#allocation7 + $0x38] sm:$0xff]
    %v337 = vld [vmem:[%s0] sm:$0xff]
    %v338 = vld [vmem:[%s6] sm:$0xff]
    %v339 = vld [vmem:[%s6 + $0x8] sm:$0xff]
    %v340 = vld [vmem:[%s6 + $0x10] sm:$0xff]
    %v341 = vld [vmem:[%s6 + $0x18] sm:$0xff]
    %v342 = vld [vmem:[#allocation8] sm:$0xff]
    %v343 = vld [vmem:[#allocation8 + $0x8] sm:$0xff]
    %v344 = vld [vmem:[#allocation8 + $0x10] sm:$0xff]
    %v345 = vld [vmem:[#allocation8 + $0x18] sm:$0xff]
    %v346 = vld [vmem:[#allocation8 + $0x20] sm:$0xff]
    %v347 = vld [vmem:[#allocation8 + $0x28] sm:$0xff]
    %v348 = vld [vmem:[#allocation8 + $0x30] sm:$0xff]
    %v349 = vld [vmem:[#allocation8 + $0x38] sm:$0xff]
    %v350 = vld [vmem:[#allocation8 + $0x40] sm:$0xff]
    %v351 = vld [vmem:[#allocation8 + $0x48] sm:$0xff]
    %v352 = vld [vmem:[#allocation8 + $0x50] sm:$0xff]
    %v353 = vld [vmem:[#allocation8 + $0x58] sm:$0xff]
    %v354 = vld [vmem:[#allocation10] sm:$0xff]
    %v355 = vld [vmem:[#allocation11] sm:$0xff]
    %v356 = vld [vmem:[#allocation11 + $0x8] sm:$0xff]
    %v357 = vld [vmem:[#allocation11 + $0x10] sm:$0xff]
    %v358 = vld [vmem:[#allocation11 + $0x18] sm:$0xff]
    %v359 = vld [vmem:[#allocation11 + $0x20] sm:$0xff]
    %v360 = vld [vmem:[#allocation11 + $0x28] sm:$0xff]
    %v361 = vld [vmem:[#allocation11 + $0x30] sm:$0xff]
    %v362 = vld [vmem:[#allocation11 + $0x38] sm:$0xff]
    %v363 = vld [vmem:[#allocation11 + $0x40] sm:$0xff]
    %v364 = vld [vmem:[#allocation11 + $0x48] sm:$0xff]
    %v365 = vld [vmem:[#allocation11 + $0x50] sm:$0xff]
    %v366 = vld [vmem:[#allocation11 + $0x58] sm:$0xff]
    %v367 = vld [vmem:[#allocation13] sm:$0x1]
    %vm368 = vcmask 261120
    %v370 = vsel %vm368, %v337, 0
    %372 = vmatpush.msra.mxu0 0.0
    %373 = vmatpush.msra.mxu0 0.0
    %374 = vmatpush.msra.mxu0 0.0
    %375 = vmatpush.msra.mxu0 0.0
    %376 = vmatpush.msra.mxu0 0.0
    %377 = vmatpush.msra.mxu0 0.0
    %378 = vmatpush.msra.mxu0 0.0
    %379 = vmatpush.msra.mxu0 0.0
    %380 = vmatpush.msra.mxu0 0.0
    %381 = vmatpush.msra.mxu0 0.0
    %382 = vmatpush.msra.mxu0 0.0
    %383 = vmatpush.msra.mxu0 0.0
    %384 = vmatpush.msra.mxu0 %v341
    %385 = vmatpush.msra.mxu0 %v340
    %386 = vmatpush.msra.mxu0 %v339
    %387 = vmatpush.msra.mxu0 %v338
    %388 = vmatmul.f32.gmra.mxu0 %v370
    %v389 = vpop.f32.mrf.mxu0
    %v390 = vadd.f32 0.0, %v389
    %391 = vdwg.mxu0
    %vm392 = vcmask 785408
    %v394 = vsel %vm392, %v390, 0
    %396 = vmatpush.msra.mxu0 0.0
    %397 = vmatpush.msra.mxu0 0.0
    %398 = vmatpush.msra.mxu0 0.0
    %399 = vmatpush.msra.mxu0 0.0
    %400 = vmatpush.msra.mxu0 %v353
    %401 = vmatpush.msra.mxu0 %v352
    %402 = vmatpush.msra.mxu0 %v351
    %403 = vmatpush.msra.mxu0 %v350
    %404 = vmatpush.msra.mxu0 %v349
    %405 = vmatpush.msra.mxu0 %v348
    %406 = vmatpush.msra.mxu0 %v347
    %407 = vmatpush.msra.mxu0 %v346
    %408 = vmatpush.msra.mxu0 %v345
    %409 = vmatpush.msra.mxu0 %v344
    %410 = vmatpush.msra.mxu0 %v343
    %411 = vmatpush.msra.mxu0 %v342
    %412 = vmatmul.f32.gmra.mxu0 %v394
    %v413 = vpop.f32.mrf.mxu0
    %v414 = vadd.f32 0.0, %v413
    %415 = vdwg.mxu0
    %vm416 = vcmask 64512
    %v418 = vsel %vm416, %v414, 0
    %420 = vmatpush.msra.mxu0 0.0
    %421 = vmatpush.msra.mxu0 0.0
    %422 = vmatpush.msra.mxu0 0.0
    %423 = vmatpush.msra.mxu0 0.0
    %424 = vmatpush.msra.mxu0 0.0
    %425 = vmatpush.msra.mxu0 0.0
    %426 = vmatpush.msra.mxu0 0.0
    %427 = vmatpush.msra.mxu0 0.0
    %428 = vmatpush.msra.mxu0 0.0
    %429 = vmatpush.msra.mxu0 0.0
    %430 = vmatpush.msra.mxu0 0.0
    %431 = vmatpush.msra.mxu0 0.0
    %432 = vmatpush.msra.mxu0 0.0
    %433 = vmatpush.msra.mxu0 0.0
    %434 = vmatpush.msra.mxu0 0.0
    %435 = vmatpush.msra.mxu0 %v354
    %436 = vmatmul.f32.gmra.mxu0 %v418
    %v437 = vpop.f32.mrf.mxu0
    %v438 = vadd.f32 0.0, %v437
    %439 = vdwg.mxu0
    %v441 = vsel %vm416, %v321, 0
    %v444 = vsel %vm416, %v322, 0
    %v447 = vsel %vm416, %v323, 0
    %v450 = vsel %vm416, %v324, 0
    %v453 = vsel %vm416, %v325, 0
    %v456 = vsel %vm416, %v326, 0
    %v459 = vsel %vm416, %v327, 0
    %v462 = vsel %vm416, %v328, 0
    %464 = vmatpush.msra.mxu0 0.0
    %465 = vmatpush.msra.mxu0 0.0
    %466 = vmatpush.msra.mxu0 0.0
    %467 = vmatpush.msra.mxu0 0.0
    %468 = vmatpush.msra.mxu0 0.0
    %469 = vmatpush.msra.mxu0 0.0
    %470 = vmatpush.msra.mxu0 0.0
    %471 = vmatpush.msra.mxu0 0.0
    %472 = vmatpush.msra.mxu0 0.0
    %473 = vmatpush.msra.mxu0 0.0
    %474 = vmatpush.msra.mxu0 0.0
    %475 = vmatpush.msra.mxu0 0.0
    %476 = vmatpush.msra.mxu0 0.0
    %477 = vmatpush.msra.mxu0 0.0
    %478 = vmatpush.msra.mxu0 0.0
    %479 = vmatpush.msra.mxu0 %v438
    %480 = vmatmul.f32.gmra.mxu0 %v441
    %v481 = vpop.f32.mrf.mxu0
    %v482 = vadd.f32 0.0, %v481
    %483 = vmatmul.f32.gmra.mxu0 %v444
    %v484 = vpop.f32.mrf.mxu0
    %v485 = vadd.f32 0.0, %v484
    %486 = vmatmul.f32.gmra.mxu0 %v447
    %v487 = vpop.f32.mrf.mxu0
    %v488 = vadd.f32 0.0, %v487
    %489 = vmatmul.f32.gmra.mxu0 %v450
    %v490 = vpop.f32.mrf.mxu0
    %v491 = vadd.f32 0.0, %v490
    %492 = vmatmul.f32.gmra.mxu0 %v453
    %v493 = vpop.f32.mrf.mxu0
    %v494 = vadd.f32 0.0, %v493
    %495 = vmatmul.f32.gmra.mxu0 %v456
    %v496 = vpop.f32.mrf.mxu0
    %v497 = vadd.f32 0.0, %v496
    %498 = vmatmul.f32.gmra.mxu0 %v459
    %v499 = vpop.f32.mrf.mxu0
    %v500 = vadd.f32 0.0, %v499
    %501 = vmatmul.f32.gmra.mxu0 %v462
    %v502 = vpop.f32.mrf.mxu0
    %v503 = vadd.f32 0.0, %v502
    %504 = vdwg.mxu0
    %506 = vset.pattern.permute.xlu0 0
    %507 = vperm.xlu0 %506, %v482
    %v508 = vpop.permute.xlu0 %507
    %511 = vset.pattern.permute.xlu0 0
    %512 = vperm.xlu0 %511, %v485
    %v513 = vpop.permute.xlu0 %512
    %516 = vset.pattern.permute.xlu0 0
    %517 = vperm.xlu0 %516, %v488
    %v518 = vpop.permute.xlu0 %517
    %521 = vset.pattern.permute.xlu0 0
    %522 = vperm.xlu0 %521, %v491
    %v523 = vpop.permute.xlu0 %522
    %526 = vset.pattern.permute.xlu0 0
    %527 = vperm.xlu0 %526, %v494
    %v528 = vpop.permute.xlu0 %527
    %531 = vset.pattern.permute.xlu0 0
    %532 = vperm.xlu0 %531, %v497
    %v533 = vpop.permute.xlu0 %532
    %536 = vset.pattern.permute.xlu0 0
    %537 = vperm.xlu0 %536, %v500
    %v538 = vpop.permute.xlu0 %537
    %541 = vset.pattern.permute.xlu0 0
    %542 = vperm.xlu0 %541, %v503
    %v543 = vpop.permute.xlu0 %542
    %v545 = vmul.f32 %v329, %v508
    %v546 = vmul.f32 %v330, %v513
    %v547 = vmul.f32 %v331, %v518
    %v548 = vmul.f32 %v332, %v523
    %v549 = vmul.f32 %v333, %v528
    %v550 = vmul.f32 %v334, %v533
    %v551 = vmul.f32 %v335, %v538
    %v552 = vmul.f32 %v336, %v543
    %553 = vset.pattern.permute.xlu0 2
    %554 = vperm.xlu0 %553, %v482
    %v555 = vpop.permute.xlu0 %554
    %557 = vset.pattern.permute.xlu0 2
    %558 = vperm.xlu0 %557, %v485
    %v559 = vpop.permute.xlu0 %558
    %561 = vset.pattern.permute.xlu0 2
    %562 = vperm.xlu0 %561, %v488
    %v563 = vpop.permute.xlu0 %562
    %565 = vset.pattern.permute.xlu0 2
    %566 = vperm.xlu0 %565, %v491
    %v567 = vpop.permute.xlu0 %566
    %569 = vset.pattern.permute.xlu0 2
    %570 = vperm.xlu0 %569, %v494
    %v571 = vpop.permute.xlu0 %570
    %573 = vset.pattern.permute.xlu0 2
    %574 = vperm.xlu0 %573, %v497
    %v575 = vpop.permute.xlu0 %574
    %577 = vset.pattern.permute.xlu0 2
    %578 = vperm.xlu0 %577, %v500
    %v579 = vpop.permute.xlu0 %578
    %581 = vset.pattern.permute.xlu0 2
    %582 = vperm.xlu0 %581, %v503
    %v583 = vpop.permute.xlu0 %582
    %v585 = vmul.f32 %v329, %v555
    %v586 = vmul.f32 %v330, %v559
    %v587 = vmul.f32 %v331, %v563
    %v588 = vmul.f32 %v332, %v567
    %v589 = vmul.f32 %v333, %v571
    %v590 = vmul.f32 %v334, %v575
    %v591 = vmul.f32 %v335, %v579
    %v592 = vmul.f32 %v336, %v583
    %vm593 = vcmask 523264
    %v595 = vsel %vm593, %v320, 0
    %597 = vmatpush.msra.mxu0 0.0
    %598 = vmatpush.msra.mxu0 0.0
    %599 = vmatpush.msra.mxu0 0.0
    %600 = vmatpush.msra.mxu0 0.0
    %601 = vmatpush.msra.mxu0 0.0
    %602 = vmatpush.msra.mxu0 0.0
    %603 = vmatpush.msra.mxu0 0.0
    %604 = vmatpush.msra.mxu0 0.0
    %605 = vmatpush.msra.mxu0 %v592
    %606 = vmatpush.msra.mxu0 %v591
    %607 = vmatpush.msra.mxu0 %v590
    %608 = vmatpush.msra.mxu0 %v589
    %609 = vmatpush.msra.mxu0 %v588
    %610 = vmatpush.msra.mxu0 %v587
    %611 = vmatpush.msra.mxu0 %v586
    %612 = vmatpush.msra.mxu0 %v585
    %613 = vmatmul.f32.gmra.mxu0 %v595
    %v614 = vpop.f32.mrf.mxu0
    %v615 = vadd.f32 0.0, %v614
    %616 = vdwg.mxu0
    %v618 = vsel %vm593, %v319, 0
    %620 = vmatpush.msra.mxu0 0.0
    %621 = vmatpush.msra.mxu0 0.0
    %622 = vmatpush.msra.mxu0 0.0
    %623 = vmatpush.msra.mxu0 0.0
    %624 = vmatpush.msra.mxu0 0.0
    %625 = vmatpush.msra.mxu0 0.0
    %626 = vmatpush.msra.mxu0 0.0
    %627 = vmatpush.msra.mxu0 0.0
    %628 = vmatpush.msra.mxu0 %v552
    %629 = vmatpush.msra.mxu0 %v551
    %630 = vmatpush.msra.mxu0 %v550
    %631 = vmatpush.msra.mxu0 %v549
    %632 = vmatpush.msra.mxu0 %v548
    %633 = vmatpush.msra.mxu0 %v547
    %634 = vmatpush.msra.mxu0 %v546
    %635 = vmatpush.msra.mxu0 %v545
    %636 = vmatmul.f32.gmra.mxu0 %v618
    %v637 = vpop.f32.mrf.mxu0
    %v638 = vadd.f32 %v615, %v637
    %639 = vdwg.mxu0
    %vm640 = vcmp.gt.f32.partialorder %v638, 0.0
    %v641 = vmul.f32 %v638, 0.01
    %v642 = vsel %vm640, %v638, %v641
    %v643 = vld [vmem:[%s1] sm:$0xff]
    %vm644 = vcmp.gt.f32.partialorder %v643, 0.0
    %v645 = vsel %vm644, %v642, -9e+15
    %v646 = vsel %vm416, %v645, -inf
    %647 = vmax.xlane.f32.xlu0 %v646
    %v648 = vpop.xlane.xlu0 %647
    %v649 = vsub.f32 %v645, %v648
    %v650 = vmul.f32 %v649, 1.442695
    %v651 = vpow.pop %v650
    %v652 = vsel %vm416, %v651, 0.0
    %653 = vadd.xlane.f32.xlu0 %v652
    %v654 = vpop.xlane.xlu0 %653
    %v655 = vrcp.pop %v654
    %v656 = vmul.f32 %v654, %v655
    %v657 = vsub.f32 1.0, %v656
    %v658 = vmul.f32 %v655, %v657
    %v659 = vadd.f32 %v655, %v658
    %vm660 = vweird.f32 %v654
    %vm661 = vweird.f32 %v655
    %vm662 = vmor %vm660, %vm661
    %v663 = vsel %vm662, %v655, %v659
    %v664 = vand.u32 2147483647, %v654
    %vm665 = vcmp.eq.f32.partialorder %v664, 8.507059e+37
    %v666 = vand.u32 %v654, 2147483648
    %v667 = vor.u32 1.1754944e-38, %v666
    %v668 = vsel %vm665, %v667, %v663
    %v669 = vmul.f32 %v651, %v668
    %v671 = vsel %vm416, %v669, 0
    %673 = vmatpush.msra.mxu0 0.0
    %674 = vmatpush.msra.mxu0 0.0
    %675 = vmatpush.msra.mxu0 0.0
    %676 = vmatpush.msra.mxu0 0.0
    %677 = vmatpush.msra.mxu0 0.0
    %678 = vmatpush.msra.mxu0 0.0
    %679 = vmatpush.msra.mxu0 0.0
    %680 = vmatpush.msra.mxu0 0.0
    %681 = vmatpush.msra.mxu0 0.0
    %682 = vmatpush.msra.mxu0 0.0
    %683 = vmatpush.msra.mxu0 0.0
    %684 = vmatpush.msra.mxu0 0.0
    %685 = vmatpush.msra.mxu0 0.0
    %686 = vmatpush.msra.mxu0 0.0
    %687 = vmatpush.msra.mxu0 0.0
    %688 = vmatpush.msra.mxu0 %v390
    %689 = vmatmul.f32.gmra.mxu0 %v671
    %v690 = vpop.f32.mrf.mxu0
    %v691 = vadd.f32 0.0, %v690
    %692 = vdwg.mxu0
    %v694 = vsel %vm368, %v691, 0
    %696 = vmatpush.msra.mxu0 0.0
    %697 = vmatpush.msra.mxu0 0.0
    %698 = vmatpush.msra.mxu0 0.0
    %699 = vmatpush.msra.mxu0 0.0
    %700 = vmatpush.msra.mxu0 0.0
    %701 = vmatpush.msra.mxu0 0.0
    %702 = vmatpush.msra.mxu0 0.0
    %703 = vmatpush.msra.mxu0 0.0
    %704 = vmatpush.msra.mxu0 0.0
    %705 = vmatpush.msra.mxu0 0.0
    %706 = vmatpush.msra.mxu0 0.0
    %707 = vmatpush.msra.mxu0 0.0
    %708 = vmatpush.msra.mxu0 %v358
    %709 = vmatpush.msra.mxu0 %v357
    %710 = vmatpush.msra.mxu0 %v356
    %711 = vmatpush.msra.mxu0 %v355
    %712 = vmatmul.f32.gmra.mxu0 %v694
    %v713 = vpop.f32.mrf.mxu0
    %v714 = vadd.f32 0.0, %v713
    %715 = vdwg.mxu0
    %716 = vrot.lane.b32.xlu0 %v390, 64
    %v717 = vpop.permute.xlu0 %716
    %v718 = vsel %vm368, %v717, 0
    %720 = vmatpush.msra.mxu0 0.0
    %721 = vmatpush.msra.mxu0 0.0
    %722 = vmatpush.msra.mxu0 0.0
    %723 = vmatpush.msra.mxu0 0.0
    %724 = vmatpush.msra.mxu0 0.0
    %725 = vmatpush.msra.mxu0 0.0
    %726 = vmatpush.msra.mxu0 0.0
    %727 = vmatpush.msra.mxu0 0.0
    %728 = vmatpush.msra.mxu0 0.0
    %729 = vmatpush.msra.mxu0 0.0
    %730 = vmatpush.msra.mxu0 0.0
    %731 = vmatpush.msra.mxu0 0.0
    %732 = vmatpush.msra.mxu0 %v366
    %733 = vmatpush.msra.mxu0 %v365
    %734 = vmatpush.msra.mxu0 %v364
    %735 = vmatpush.msra.mxu0 %v363
    %736 = vmatmul.f32.gmra.mxu0 %v718
    %v737 = vpop.f32.mrf.mxu0
    %v738 = vadd.f32 %v714, %v737
    %739 = vdwg.mxu0
    %740 = vset.pattern.permute.xlu0 1
    %741 = vperm.xlu0 %740, %v482
    %v742 = vpop.permute.xlu0 %741
    %744 = vset.pattern.permute.xlu0 1
    %745 = vperm.xlu0 %744, %v485
    %v746 = vpop.permute.xlu0 %745
    %748 = vset.pattern.permute.xlu0 1
    %749 = vperm.xlu0 %748, %v488
    %v750 = vpop.permute.xlu0 %749
    %752 = vset.pattern.permute.xlu0 1
    %753 = vperm.xlu0 %752, %v491
    %v754 = vpop.permute.xlu0 %753
    %756 = vset.pattern.permute.xlu0 1
    %757 = vperm.xlu0 %756, %v494
    %v758 = vpop.permute.xlu0 %757
    %760 = vset.pattern.permute.xlu0 1
    %761 = vperm.xlu0 %760, %v497
    %v762 = vpop.permute.xlu0 %761
    %764 = vset.pattern.permute.xlu0 1
    %765 = vperm.xlu0 %764, %v500
    %v766 = vpop.permute.xlu0 %765
    %768 = vset.pattern.permute.xlu0 1
    %769 = vperm.xlu0 %768, %v503
    %v770 = vpop.permute.xlu0 %769
    %v772 = vmul.f32 %v329, %v742
    %v773 = vmul.f32 %v330, %v746
    %v774 = vmul.f32 %v331, %v750
    %v775 = vmul.f32 %v332, %v754
    %v776 = vmul.f32 %v333, %v758
    %v777 = vmul.f32 %v334, %v762
    %v778 = vmul.f32 %v335, %v766
    %v779 = vmul.f32 %v336, %v770
    %780 = vset.pattern.permute.xlu0 3
    %781 = vperm.xlu0 %780, %v482
    %v782 = vpop.permute.xlu0 %781
    %784 = vset.pattern.permute.xlu0 3
    %785 = vperm.xlu0 %784, %v485
    %v786 = vpop.permute.xlu0 %785
    %788 = vset.pattern.permute.xlu0 3
    %789 = vperm.xlu0 %788, %v488
    %v790 = vpop.permute.xlu0 %789
    %792 = vset.pattern.permute.xlu0 3
    %793 = vperm.xlu0 %792, %v491
    %v794 = vpop.permute.xlu0 %793
    %796 = vset.pattern.permute.xlu0 3
    %797 = vperm.xlu0 %796, %v494
    %v798 = vpop.permute.xlu0 %797
    %800 = vset.pattern.permute.xlu0 3
    %801 = vperm.xlu0 %800, %v497
    %v802 = vpop.permute.xlu0 %801
    %804 = vset.pattern.permute.xlu0 3
    %805 = vperm.xlu0 %804, %v500
    %v806 = vpop.permute.xlu0 %805
    %808 = vset.pattern.permute.xlu0 3
    %809 = vperm.xlu0 %808, %v503
    %v810 = vpop.permute.xlu0 %809
    %v812 = vmul.f32 %v329, %v782
    %v813 = vmul.f32 %v330, %v786
    %v814 = vmul.f32 %v331, %v790
    %v815 = vmul.f32 %v332, %v794
    %v816 = vmul.f32 %v333, %v798
    %v817 = vmul.f32 %v334, %v802
    %v818 = vmul.f32 %v335, %v806
    %v819 = vmul.f32 %v336, %v810
    %820 = vmatpush.msra.mxu0 0.0
    %821 = vmatpush.msra.mxu0 0.0
    %822 = vmatpush.msra.mxu0 0.0
    %823 = vmatpush.msra.mxu0 0.0
    %824 = vmatpush.msra.mxu0 0.0
    %825 = vmatpush.msra.mxu0 0.0
    %826 = vmatpush.msra.mxu0 0.0
    %827 = vmatpush.msra.mxu0 0.0
    %828 = vmatpush.msra.mxu0 %v819
    %829 = vmatpush.msra.mxu0 %v818
    %830 = vmatpush.msra.mxu0 %v817
    %831 = vmatpush.msra.mxu0 %v816
    %832 = vmatpush.msra.mxu0 %v815
    %833 = vmatpush.msra.mxu0 %v814
    %834 = vmatpush.msra.mxu0 %v813
    %835 = vmatpush.msra.mxu0 %v812
    %836 = vmatmul.f32.gmra.mxu0 %v595
    %v837 = vpop.f32.mrf.mxu0
    %v838 = vadd.f32 0.0, %v837
    %839 = vdwg.mxu0
    %840 = vmatpush.msra.mxu0 0.0
    %841 = vmatpush.msra.mxu0 0.0
    %842 = vmatpush.msra.mxu0 0.0
    %843 = vmatpush.msra.mxu0 0.0
    %844 = vmatpush.msra.mxu0 0.0
    %845 = vmatpush.msra.mxu0 0.0
    %846 = vmatpush.msra.mxu0 0.0
    %847 = vmatpush.msra.mxu0 0.0
    %848 = vmatpush.msra.mxu0 %v779
    %849 = vmatpush.msra.mxu0 %v778
    %850 = vmatpush.msra.mxu0 %v777
    %851 = vmatpush.msra.mxu0 %v776
    %852 = vmatpush.msra.mxu0 %v775
    %853 = vmatpush.msra.mxu0 %v774
    %854 = vmatpush.msra.mxu0 %v773
    %855 = vmatpush.msra.mxu0 %v772
    %856 = vmatmul.f32.gmra.mxu0 %v618
    %v857 = vpop.f32.mrf.mxu0
    %v858 = vadd.f32 %v838, %v857
    %859 = vdwg.mxu0
    %vm860 = vcmp.gt.f32.partialorder %v858, 0.0
    %v861 = vmul.f32 %v858, 0.01
    %v862 = vsel %vm860, %v858, %v861
    %s863 = scalar_lea.vmem %s1, 8
    %v864 = vld [vmem:[%s863] sm:$0xff]
    %vm865 = vcmp.gt.f32.partialorder %v864, 0.0
    %v866 = vsel %vm865, %v862, -9e+15
    %v867 = vsel %vm416, %v866, -inf
    %868 = vmax.xlane.f32.xlu0 %v867
    %v869 = vpop.xlane.xlu0 %868
    %v870 = vsub.f32 %v866, %v869
    %v871 = vmul.f32 %v870, 1.442695
    %v872 = vpow.pop %v871
    %v873 = vsel %vm416, %v872, 0.0
    %874 = vadd.xlane.f32.xlu0 %v873
    %v875 = vpop.xlane.xlu0 %874
    %v876 = vrcp.pop %v875
    %v877 = vmul.f32 %v875, %v876
    %v878 = vsub.f32 1.0, %v877
    %v879 = vmul.f32 %v876, %v878
    %v880 = vadd.f32 %v876, %v879
    %vm881 = vweird.f32 %v875
    %vm882 = vweird.f32 %v876
    %vm883 = vmor %vm881, %vm882
    %v884 = vsel %vm883, %v876, %v880
    %v885 = vand.u32 2147483647, %v875
    %vm886 = vcmp.eq.f32.partialorder %v885, 8.507059e+37
    %v887 = vand.u32 %v875, 2147483648
    %v888 = vor.u32 1.1754944e-38, %v887
    %v889 = vsel %vm886, %v888, %v884
    %v890 = vmul.f32 %v872, %v889
    %891 = vrot.lane.b32.xlu0 %v390, 96
    %v892 = vpop.permute.xlu0 %891
    %v895 = vsel %vm416, %v890, 0
    %897 = vmatpush.msra.mxu0 0.0
    %898 = vmatpush.msra.mxu0 0.0
    %899 = vmatpush.msra.mxu0 0.0
    %900 = vmatpush.msra.mxu0 0.0
    %901 = vmatpush.msra.mxu0 0.0
    %902 = vmatpush.msra.mxu0 0.0
    %903 = vmatpush.msra.mxu0 0.0
    %904 = vmatpush.msra.mxu0 0.0
    %905 = vmatpush.msra.mxu0 0.0
    %906 = vmatpush.msra.mxu0 0.0
    %907 = vmatpush.msra.mxu0 0.0
    %908 = vmatpush.msra.mxu0 0.0
    %909 = vmatpush.msra.mxu0 0.0
    %910 = vmatpush.msra.mxu0 0.0
    %911 = vmatpush.msra.mxu0 0.0
    %912 = vmatpush.msra.mxu0 %v892
    %913 = vmatmul.f32.gmra.mxu0 %v895
    %v914 = vpop.f32.mrf.mxu0
    %v915 = vadd.f32 0.0, %v914
    %916 = vdwg.mxu0
    %v918 = vsel %vm368, %v915, 0
    %920 = vmatpush.msra.mxu0 0.0
    %921 = vmatpush.msra.mxu0 0.0
    %922 = vmatpush.msra.mxu0 0.0
    %923 = vmatpush.msra.mxu0 0.0
    %924 = vmatpush.msra.mxu0 0.0
    %925 = vmatpush.msra.mxu0 0.0
    %926 = vmatpush.msra.mxu0 0.0
    %927 = vmatpush.msra.mxu0 0.0
    %928 = vmatpush.msra.mxu0 0.0
    %929 = vmatpush.msra.mxu0 0.0
    %930 = vmatpush.msra.mxu0 0.0
    %931 = vmatpush.msra.mxu0 0.0
    %932 = vmatpush.msra.mxu0 %v362
    %933 = vmatpush.msra.mxu0 %v361
    %934 = vmatpush.msra.mxu0 %v360
    %935 = vmatpush.msra.mxu0 %v359
    %936 = vmatmul.f32.gmra.mxu0 %v918
    %v937 = vpop.f32.mrf.mxu0
    %v938 = vadd.f32 0.0, %v937
    %939 = vdwg.mxu0
    %v940 = vadd.f32 %v738, %v938
    %v942 = vperm.slane %v367, 0
    %v944 = vadd.f32 %v940, %v942
    %vm945 = vcmp.gt.f32.partialorder %v944, 0.0
    %v946 = vmul.f32 %v944, 0.01
    %v947 = vsel %vm945, %v944, %v946
    %v948 = vadd.f32 %v947, %v337
    %v949 = vld [vmem:[#allocation14] sm:$0xff]
    %v950 = vld [vmem:[#allocation14 + $0x8] sm:$0xff]
    %v951 = vld [vmem:[#allocation14 + $0x10] sm:$0xff]
    %v952 = vld [vmem:[#allocation14 + $0x18] sm:$0xff]
    %v953 = vld [vmem:[#allocation14 + $0x20] sm:$0xff]
    %v954 = vld [vmem:[#allocation14 + $0x28] sm:$0xff]
    %v955 = vld [vmem:[#allocation14 + $0x30] sm:$0xff]
    %v956 = vld [vmem:[#allocation14 + $0x38] sm:$0xff]
    %v957 = vld [vmem:[#allocation16] sm:$0xff]
    %v958 = vld [vmem:[#allocation16 + $0x8] sm:$0xff]
    %v959 = vld [vmem:[#allocation16 + $0x10] sm:$0xff]
    %v960 = vld [vmem:[#allocation16 + $0x18] sm:$0xff]
    %v961 = vld [vmem:[#allocation16 + $0x20] sm:$0xff]
    %v962 = vld [vmem:[#allocation16 + $0x28] sm:$0xff]
    %v963 = vld [vmem:[#allocation16 + $0x30] sm:$0xff]
    %v964 = vld [vmem:[#allocation16 + $0x38] sm:$0xff]
    %v965 = vld [vmem:[#allocation16 + $0x40] sm:$0xff]
    %v966 = vld [vmem:[#allocation16 + $0x48] sm:$0xff]
    %v967 = vld [vmem:[#allocation16 + $0x50] sm:$0xff]
    %v968 = vld [vmem:[#allocation16 + $0x58] sm:$0xff]
    %v969 = vld [vmem:[#allocation17] sm:$0xff]
    %v970 = vld [vmem:[#allocation19] sm:$0xff]
    %v971 = vld [vmem:[#allocation19 + $0x8] sm:$0xff]
    %v972 = vld [vmem:[#allocation19 + $0x10] sm:$0xff]
    %v973 = vld [vmem:[#allocation19 + $0x18] sm:$0xff]
    %v974 = vld [vmem:[#allocation19 + $0x20] sm:$0xff]
    %v975 = vld [vmem:[#allocation19 + $0x28] sm:$0xff]
    %v976 = vld [vmem:[#allocation19 + $0x30] sm:$0xff]
    %v977 = vld [vmem:[#allocation19 + $0x38] sm:$0xff]
    %v978 = vld [vmem:[#allocation19 + $0x40] sm:$0xff]
    %v979 = vld [vmem:[#allocation19 + $0x48] sm:$0xff]
    %v980 = vld [vmem:[#allocation19 + $0x50] sm:$0xff]
    %v981 = vld [vmem:[#allocation19 + $0x58] sm:$0xff]
    %v982 = vld [vmem:[#allocation20] sm:$0x1]
    %v984 = vsel %vm368, %v948, 0
    %986 = vmatpush.msra.mxu0 0.0
    %987 = vmatpush.msra.mxu0 0.0
    %988 = vmatpush.msra.mxu0 0.0
    %989 = vmatpush.msra.mxu0 0.0
    %990 = vmatpush.msra.mxu0 0.0
    %991 = vmatpush.msra.mxu0 0.0
    %992 = vmatpush.msra.mxu0 0.0
    %993 = vmatpush.msra.mxu0 0.0
    %994 = vmatpush.msra.mxu0 0.0
    %995 = vmatpush.msra.mxu0 0.0
    %996 = vmatpush.msra.mxu0 0.0
    %997 = vmatpush.msra.mxu0 0.0
    %998 = vmatpush.msra.mxu0 %v956
    %999 = vmatpush.msra.mxu0 %v955
    %1000 = vmatpush.msra.mxu0 %v954
    %1001 = vmatpush.msra.mxu0 %v953
    %1002 = vmatmul.f32.gmra.mxu0 %v984
    %v1003 = vpop.f32.mrf.mxu0
    %v1004 = vadd.f32 0.0, %v1003
    %1005 = vdwg.mxu0
    %1006 = vmatpush.msra.mxu0 0.0
    %1007 = vmatpush.msra.mxu0 0.0
    %1008 = vmatpush.msra.mxu0 0.0
    %1009 = vmatpush.msra.mxu0 0.0
    %1010 = vmatpush.msra.mxu0 0.0
    %1011 = vmatpush.msra.mxu0 0.0
    %1012 = vmatpush.msra.mxu0 0.0
    %1013 = vmatpush.msra.mxu0 0.0
    %1014 = vmatpush.msra.mxu0 0.0
    %1015 = vmatpush.msra.mxu0 0.0
    %1016 = vmatpush.msra.mxu0 0.0
    %1017 = vmatpush.msra.mxu0 0.0
    %1018 = vmatpush.msra.mxu0 %v952
    %1019 = vmatpush.msra.mxu0 %v951
    %1020 = vmatpush.msra.mxu0 %v950
    %1021 = vmatpush.msra.mxu0 %v949
    %1022 = vmatmul.f32.gmra.mxu0 %v370
    %v1023 = vpop.f32.mrf.mxu0
    %v1024 = vadd.f32 %v1004, %v1023
    %1025 = vdwg.mxu0
    %v1027 = vsel %vm392, %v1024, 0
    %1029 = vmatpush.msra.mxu0 0.0
    %1030 = vmatpush.msra.mxu0 0.0
    %1031 = vmatpush.msra.mxu0 0.0
    %1032 = vmatpush.msra.mxu0 0.0
    %1033 = vmatpush.msra.mxu0 %v968
    %1034 = vmatpush.msra.mxu0 %v967
    %1035 = vmatpush.msra.mxu0 %v966
    %1036 = vmatpush.msra.mxu0 %v965
    %1037 = vmatpush.msra.mxu0 %v964
    %1038 = vmatpush.msra.mxu0 %v963
    %1039 = vmatpush.msra.mxu0 %v962
    %1040 = vmatpush.msra.mxu0 %v961
    %1041 = vmatpush.msra.mxu0 %v960
    %1042 = vmatpush.msra.mxu0 %v959
    %1043 = vmatpush.msra.mxu0 %v958
    %1044 = vmatpush.msra.mxu0 %v957
    %1045 = vmatmul.f32.gmra.mxu0 %v1027
    %v1046 = vpop.f32.mrf.mxu0
    %v1047 = vadd.f32 0.0, %v1046
    %1048 = vdwg.mxu0
    %v1050 = vsel %vm416, %v1047, 0
    %1052 = vmatpush.msra.mxu0 0.0
    %1053 = vmatpush.msra.mxu0 0.0
    %1054 = vmatpush.msra.mxu0 0.0
    %1055 = vmatpush.msra.mxu0 0.0
    %1056 = vmatpush.msra.mxu0 0.0
    %1057 = vmatpush.msra.mxu0 0.0
    %1058 = vmatpush.msra.mxu0 0.0
    %1059 = vmatpush.msra.mxu0 0.0
    %1060 = vmatpush.msra.mxu0 0.0
    %1061 = vmatpush.msra.mxu0 0.0
    %1062 = vmatpush.msra.mxu0 0.0
    %1063 = vmatpush.msra.mxu0 0.0
    %1064 = vmatpush.msra.mxu0 0.0
    %1065 = vmatpush.msra.mxu0 0.0
    %1066 = vmatpush.msra.mxu0 0.0
    %1067 = vmatpush.msra.mxu0 %v969
    %1068 = vmatmul.f32.gmra.mxu0 %v1050
    %v1069 = vpop.f32.mrf.mxu0
    %v1070 = vadd.f32 0.0, %v1069
    %1071 = vdwg.mxu0
    %1072 = vmatpush.msra.mxu0 0.0
    %1073 = vmatpush.msra.mxu0 0.0
    %1074 = vmatpush.msra.mxu0 0.0
    %1075 = vmatpush.msra.mxu0 0.0
    %1076 = vmatpush.msra.mxu0 0.0
    %1077 = vmatpush.msra.mxu0 0.0
    %1078 = vmatpush.msra.mxu0 0.0
    %1079 = vmatpush.msra.mxu0 0.0
    %1080 = vmatpush.msra.mxu0 0.0
    %1081 = vmatpush.msra.mxu0 0.0
    %1082 = vmatpush.msra.mxu0 0.0
    %1083 = vmatpush.msra.mxu0 0.0
    %1084 = vmatpush.msra.mxu0 0.0
    %1085 = vmatpush.msra.mxu0 0.0
    %1086 = vmatpush.msra.mxu0 0.0
    %1087 = vmatpush.msra.mxu0 %v1070
    %1088 = vmatmul.f32.gmra.mxu0 %v441
    %v1089 = vpop.f32.mrf.mxu0
    %v1090 = vadd.f32 0.0, %v1089
    %1091 = vmatmul.f32.gmra.mxu0 %v444
    %v1092 = vpop.f32.mrf.mxu0
    %v1093 = vadd.f32 0.0, %v1092
    %1094 = vmatmul.f32.gmra.mxu0 %v447
    %v1095 = vpop.f32.mrf.mxu0
    %v1096 = vadd.f32 0.0, %v1095
    %1097 = vmatmul.f32.gmra.mxu0 %v450
    %v1098 = vpop.f32.mrf.mxu0
    %v1099 = vadd.f32 0.0, %v1098
    %1100 = vmatmul.f32.gmra.mxu0 %v453
    %v1101 = vpop.f32.mrf.mxu0
    %v1102 = vadd.f32 0.0, %v1101
    %1103 = vmatmul.f32.gmra.mxu0 %v456
    %v1104 = vpop.f32.mrf.mxu0
    %v1105 = vadd.f32 0.0, %v1104
    %1106 = vmatmul.f32.gmra.mxu0 %v459
    %v1107 = vpop.f32.mrf.mxu0
    %v1108 = vadd.f32 0.0, %v1107
    %1109 = vmatmul.f32.gmra.mxu0 %v462
    %v1110 = vpop.f32.mrf.mxu0
    %v1111 = vadd.f32 0.0, %v1110
    %1112 = vdwg.mxu0
    %1114 = vset.pattern.permute.xlu0 0
    %1115 = vperm.xlu0 %1114, %v1090
    %v1116 = vpop.permute.xlu0 %1115
    %1119 = vset.pattern.permute.xlu0 0
    %1120 = vperm.xlu0 %1119, %v1093
    %v1121 = vpop.permute.xlu0 %1120
    %1124 = vset.pattern.permute.xlu0 0
    %1125 = vperm.xlu0 %1124, %v1096
    %v1126 = vpop.permute.xlu0 %1125
    %1129 = vset.pattern.permute.xlu0 0
    %1130 = vperm.xlu0 %1129, %v1099
    %v1131 = vpop.permute.xlu0 %1130
    %1134 = vset.pattern.permute.xlu0 0
    %1135 = vperm.xlu0 %1134, %v1102
    %v1136 = vpop.permute.xlu0 %1135
    %1139 = vset.pattern.permute.xlu0 0
    %1140 = vperm.xlu0 %1139, %v1105
    %v1141 = vpop.permute.xlu0 %1140
    %1144 = vset.pattern.permute.xlu0 0
    %1145 = vperm.xlu0 %1144, %v1108
    %v1146 = vpop.permute.xlu0 %1145
    %1149 = vset.pattern.permute.xlu0 0
    %1150 = vperm.xlu0 %1149, %v1111
    %v1151 = vpop.permute.xlu0 %1150
    %v1153 = vmul.f32 %v329, %v1116
    %v1154 = vmul.f32 %v330, %v1121
    %v1155 = vmul.f32 %v331, %v1126
    %v1156 = vmul.f32 %v332, %v1131
    %v1157 = vmul.f32 %v333, %v1136
    %v1158 = vmul.f32 %v334, %v1141
    %v1159 = vmul.f32 %v335, %v1146
    %v1160 = vmul.f32 %v336, %v1151
    %1161 = vset.pattern.permute.xlu0 2
    %1162 = vperm.xlu0 %1161, %v1090
    %v1163 = vpop.permute.xlu0 %1162
    %1165 = vset.pattern.permute.xlu0 2
    %1166 = vperm.xlu0 %1165, %v1093
    %v1167 = vpop.permute.xlu0 %1166
    %1169 = vset.pattern.permute.xlu0 2
    %1170 = vperm.xlu0 %1169, %v1096
    %v1171 = vpop.permute.xlu0 %1170
    %1173 = vset.pattern.permute.xlu0 2
    %1174 = vperm.xlu0 %1173, %v1099
    %v1175 = vpop.permute.xlu0 %1174
    %1177 = vset.pattern.permute.xlu0 2
    %1178 = vperm.xlu0 %1177, %v1102
    %v1179 = vpop.permute.xlu0 %1178
    %1181 = vset.pattern.permute.xlu0 2
    %1182 = vperm.xlu0 %1181, %v1105
    %v1183 = vpop.permute.xlu0 %1182
    %1185 = vset.pattern.permute.xlu0 2
    %1186 = vperm.xlu0 %1185, %v1108
    %v1187 = vpop.permute.xlu0 %1186
    %1189 = vset.pattern.permute.xlu0 2
    %1190 = vperm.xlu0 %1189, %v1111
    %v1191 = vpop.permute.xlu0 %1190
    %v1193 = vmul.f32 %v329, %v1163
    %v1194 = vmul.f32 %v330, %v1167
    %v1195 = vmul.f32 %v331, %v1171
    %v1196 = vmul.f32 %v332, %v1175
    %v1197 = vmul.f32 %v333, %v1179
    %v1198 = vmul.f32 %v334, %v1183
    %v1199 = vmul.f32 %v335, %v1187
    %v1200 = vmul.f32 %v336, %v1191
    %1201 = vmatpush.msra.mxu0 0.0
    %1202 = vmatpush.msra.mxu0 0.0
    %1203 = vmatpush.msra.mxu0 0.0
    %1204 = vmatpush.msra.mxu0 0.0
    %1205 = vmatpush.msra.mxu0 0.0
    %1206 = vmatpush.msra.mxu0 0.0
    %1207 = vmatpush.msra.mxu0 0.0
    %1208 = vmatpush.msra.mxu0 0.0
    %1209 = vmatpush.msra.mxu0 %v1200
    %1210 = vmatpush.msra.mxu0 %v1199
    %1211 = vmatpush.msra.mxu0 %v1198
    %1212 = vmatpush.msra.mxu0 %v1197
    %1213 = vmatpush.msra.mxu0 %v1196
    %1214 = vmatpush.msra.mxu0 %v1195
    %1215 = vmatpush.msra.mxu0 %v1194
    %1216 = vmatpush.msra.mxu0 %v1193
    %1217 = vmatmul.f32.gmra.mxu0 %v595
    %v1218 = vpop.f32.mrf.mxu0
    %v1219 = vadd.f32 0.0, %v1218
    %1220 = vdwg.mxu0
    %1221 = vmatpush.msra.mxu0 0.0
    %1222 = vmatpush.msra.mxu0 0.0
    %1223 = vmatpush.msra.mxu0 0.0
    %1224 = vmatpush.msra.mxu0 0.0
    %1225 = vmatpush.msra.mxu0 0.0
    %1226 = vmatpush.msra.mxu0 0.0
    %1227 = vmatpush.msra.mxu0 0.0
    %1228 = vmatpush.msra.mxu0 0.0
    %1229 = vmatpush.msra.mxu0 %v1160
    %1230 = vmatpush.msra.mxu0 %v1159
    %1231 = vmatpush.msra.mxu0 %v1158
    %1232 = vmatpush.msra.mxu0 %v1157
    %1233 = vmatpush.msra.mxu0 %v1156
    %1234 = vmatpush.msra.mxu0 %v1155
    %1235 = vmatpush.msra.mxu0 %v1154
    %1236 = vmatpush.msra.mxu0 %v1153
    %1237 = vmatmul.f32.gmra.mxu0 %v618
    %v1238 = vpop.f32.mrf.mxu0
    %v1239 = vadd.f32 %v1219, %v1238
    %1240 = vdwg.mxu0
    %vm1241 = vcmp.gt.f32.partialorder %v1239, 0.0
    %v1242 = vmul.f32 %v1239, 0.01
    %v1243 = vsel %vm1241, %v1239, %v1242
    %v1244 = vsel %vm644, %v1243, -9e+15
    %v1245 = vsel %vm416, %v1244, -inf
    %1246 = vmax.xlane.f32.xlu0 %v1245
    %v1247 = vpop.xlane.xlu0 %1246
    %v1248 = vsub.f32 %v1244, %v1247
    %v1249 = vmul.f32 %v1248, 1.442695
    %v1250 = vpow.pop %v1249
    %v1251 = vsel %vm416, %v1250, 0.0
    %1252 = vadd.xlane.f32.xlu0 %v1251
    %v1253 = vpop.xlane.xlu0 %1252
    %v1254 = vrcp.pop %v1253
    %v1255 = vmul.f32 %v1253, %v1254
    %v1256 = vsub.f32 1.0, %v1255
    %v1257 = vmul.f32 %v1254, %v1256
    %v1258 = vadd.f32 %v1254, %v1257
    %vm1259 = vweird.f32 %v1253
    %vm1260 = vweird.f32 %v1254
    %vm1261 = vmor %vm1259, %vm1260
    %v1262 = vsel %vm1261, %v1254, %v1258
    %v1263 = vand.u32 2147483647, %v1253
    %vm1264 = vcmp.eq.f32.partialorder %v1263, 8.507059e+37
    %v1265 = vand.u32 %v1253, 2147483648
    %v1266 = vor.u32 1.1754944e-38, %v1265
    %v1267 = vsel %vm1264, %v1266, %v1262
    %v1268 = vmul.f32 %v1250, %v1267
    %v1270 = vsel %vm416, %v1268, 0
    %1272 = vmatpush.msra.mxu0 0.0
    %1273 = vmatpush.msra.mxu0 0.0
    %1274 = vmatpush.msra.mxu0 0.0
    %1275 = vmatpush.msra.mxu0 0.0
    %1276 = vmatpush.msra.mxu0 0.0
    %1277 = vmatpush.msra.mxu0 0.0
    %1278 = vmatpush.msra.mxu0 0.0
    %1279 = vmatpush.msra.mxu0 0.0
    %1280 = vmatpush.msra.mxu0 0.0
    %1281 = vmatpush.msra.mxu0 0.0
    %1282 = vmatpush.msra.mxu0 0.0
    %1283 = vmatpush.msra.mxu0 0.0
    %1284 = vmatpush.msra.mxu0 0.0
    %1285 = vmatpush.msra.mxu0 0.0
    %1286 = vmatpush.msra.mxu0 0.0
    %1287 = vmatpush.msra.mxu0 %v1024
    %1288 = vmatmul.f32.gmra.mxu0 %v1270
    %v1289 = vpop.f32.mrf.mxu0
    %v1290 = vadd.f32 0.0, %v1289
    %1291 = vdwg.mxu0
    %v1293 = vsel %vm368, %v1290, 0
    %1295 = vmatpush.msra.mxu0 0.0
    %1296 = vmatpush.msra.mxu0 0.0
    %1297 = vmatpush.msra.mxu0 0.0
    %1298 = vmatpush.msra.mxu0 0.0
    %1299 = vmatpush.msra.mxu0 0.0
    %1300 = vmatpush.msra.mxu0 0.0
    %1301 = vmatpush.msra.mxu0 0.0
    %1302 = vmatpush.msra.mxu0 0.0
    %1303 = vmatpush.msra.mxu0 0.0
    %1304 = vmatpush.msra.mxu0 0.0
    %1305 = vmatpush.msra.mxu0 0.0
    %1306 = vmatpush.msra.mxu0 0.0
    %1307 = vmatpush.msra.mxu0 %v973
    %1308 = vmatpush.msra.mxu0 %v972
    %1309 = vmatpush.msra.mxu0 %v971
    %1310 = vmatpush.msra.mxu0 %v970
    %1311 = vmatmul.f32.gmra.mxu0 %v1293
    %v1312 = vpop.f32.mrf.mxu0
    %v1313 = vadd.f32 0.0, %v1312
    %1314 = vdwg.mxu0
    %1315 = vrot.lane.b32.xlu0 %v1024, 64
    %v1316 = vpop.permute.xlu0 %1315
    %v1317 = vsel %vm368, %v1316, 0
    %1319 = vmatpush.msra.mxu0 0.0
    %1320 = vmatpush.msra.mxu0 0.0
    %1321 = vmatpush.msra.mxu0 0.0
    %1322 = vmatpush.msra.mxu0 0.0
    %1323 = vmatpush.msra.mxu0 0.0
    %1324 = vmatpush.msra.mxu0 0.0
    %1325 = vmatpush.msra.mxu0 0.0
    %1326 = vmatpush.msra.mxu0 0.0
    %1327 = vmatpush.msra.mxu0 0.0
    %1328 = vmatpush.msra.mxu0 0.0
    %1329 = vmatpush.msra.mxu0 0.0
    %1330 = vmatpush.msra.mxu0 0.0
    %1331 = vmatpush.msra.mxu0 %v981
    %1332 = vmatpush.msra.mxu0 %v980
    %1333 = vmatpush.msra.mxu0 %v979
    %1334 = vmatpush.msra.mxu0 %v978
    %1335 = vmatmul.f32.gmra.mxu0 %v1317
    %v1336 = vpop.f32.mrf.mxu0
    %v1337 = vadd.f32 %v1313, %v1336
    %1338 = vdwg.mxu0
    %1339 = vset.pattern.permute.xlu0 1
    %1340 = vperm.xlu0 %1339, %v1090
    %v1341 = vpop.permute.xlu0 %1340
    %1343 = vset.pattern.permute.xlu0 1
    %1344 = vperm.xlu0 %1343, %v1093
    %v1345 = vpop.permute.xlu0 %1344
    %1347 = vset.pattern.permute.xlu0 1
    %1348 = vperm.xlu0 %1347, %v1096
    %v1349 = vpop.permute.xlu0 %1348
    %1351 = vset.pattern.permute.xlu0 1
    %1352 = vperm.xlu0 %1351, %v1099
    %v1353 = vpop.permute.xlu0 %1352
    %1355 = vset.pattern.permute.xlu0 1
    %1356 = vperm.xlu0 %1355, %v1102
    %v1357 = vpop.permute.xlu0 %1356
    %1359 = vset.pattern.permute.xlu0 1
    %1360 = vperm.xlu0 %1359, %v1105
    %v1361 = vpop.permute.xlu0 %1360
    %1363 = vset.pattern.permute.xlu0 1
    %1364 = vperm.xlu0 %1363, %v1108
    %v1365 = vpop.permute.xlu0 %1364
    %1367 = vset.pattern.permute.xlu0 1
    %1368 = vperm.xlu0 %1367, %v1111
    %v1369 = vpop.permute.xlu0 %1368
    %v1371 = vmul.f32 %v329, %v1341
    %v1372 = vmul.f32 %v330, %v1345
    %v1373 = vmul.f32 %v331, %v1349
    %v1374 = vmul.f32 %v332, %v1353
    %v1375 = vmul.f32 %v333, %v1357
    %v1376 = vmul.f32 %v334, %v1361
    %v1377 = vmul.f32 %v335, %v1365
    %v1378 = vmul.f32 %v336, %v1369
    %1379 = vset.pattern.permute.xlu0 3
    %1380 = vperm.xlu0 %1379, %v1090
    %v1381 = vpop.permute.xlu0 %1380
    %1383 = vset.pattern.permute.xlu0 3
    %1384 = vperm.xlu0 %1383, %v1093
    %v1385 = vpop.permute.xlu0 %1384
    %1387 = vset.pattern.permute.xlu0 3
    %1388 = vperm.xlu0 %1387, %v1096
    %v1389 = vpop.permute.xlu0 %1388
    %1391 = vset.pattern.permute.xlu0 3
    %1392 = vperm.xlu0 %1391, %v1099
    %v1393 = vpop.permute.xlu0 %1392
    %1395 = vset.pattern.permute.xlu0 3
    %1396 = vperm.xlu0 %1395, %v1102
    %v1397 = vpop.permute.xlu0 %1396
    %1399 = vset.pattern.permute.xlu0 3
    %1400 = vperm.xlu0 %1399, %v1105
    %v1401 = vpop.permute.xlu0 %1400
    %1403 = vset.pattern.permute.xlu0 3
    %1404 = vperm.xlu0 %1403, %v1108
    %v1405 = vpop.permute.xlu0 %1404
    %1407 = vset.pattern.permute.xlu0 3
    %1408 = vperm.xlu0 %1407, %v1111
    %v1409 = vpop.permute.xlu0 %1408
    %v1411 = vmul.f32 %v329, %v1381
    %v1412 = vmul.f32 %v330, %v1385
    %v1413 = vmul.f32 %v331, %v1389
    %v1414 = vmul.f32 %v332, %v1393
    %v1415 = vmul.f32 %v333, %v1397
    %v1416 = vmul.f32 %v334, %v1401
    %v1417 = vmul.f32 %v335, %v1405
    %v1418 = vmul.f32 %v336, %v1409
    %1419 = vmatpush.msra.mxu0 0.0
    %1420 = vmatpush.msra.mxu0 0.0
    %1421 = vmatpush.msra.mxu0 0.0
    %1422 = vmatpush.msra.mxu0 0.0
    %1423 = vmatpush.msra.mxu0 0.0
    %1424 = vmatpush.msra.mxu0 0.0
    %1425 = vmatpush.msra.mxu0 0.0
    %1426 = vmatpush.msra.mxu0 0.0
    %1427 = vmatpush.msra.mxu0 %v1418
    %1428 = vmatpush.msra.mxu0 %v1417
    %1429 = vmatpush.msra.mxu0 %v1416
    %1430 = vmatpush.msra.mxu0 %v1415
    %1431 = vmatpush.msra.mxu0 %v1414
    %1432 = vmatpush.msra.mxu0 %v1413
    %1433 = vmatpush.msra.mxu0 %v1412
    %1434 = vmatpush.msra.mxu0 %v1411
    %1435 = vmatmul.f32.gmra.mxu0 %v595
    %v1436 = vpop.f32.mrf.mxu0
    %v1437 = vadd.f32 0.0, %v1436
    %1438 = vdwg.mxu0
    %1439 = vmatpush.msra.mxu0 0.0
    %1440 = vmatpush.msra.mxu0 0.0
    %1441 = vmatpush.msra.mxu0 0.0
    %1442 = vmatpush.msra.mxu0 0.0
    %1443 = vmatpush.msra.mxu0 0.0
    %1444 = vmatpush.msra.mxu0 0.0
    %1445 = vmatpush.msra.mxu0 0.0
    %1446 = vmatpush.msra.mxu0 0.0
    %1447 = vmatpush.msra.mxu0 %v1378
    %1448 = vmatpush.msra.mxu0 %v1377
    %1449 = vmatpush.msra.mxu0 %v1376
    %1450 = vmatpush.msra.mxu0 %v1375
    %1451 = vmatpush.msra.mxu0 %v1374
    %1452 = vmatpush.msra.mxu0 %v1373
    %1453 = vmatpush.msra.mxu0 %v1372
    %1454 = vmatpush.msra.mxu0 %v1371
    %1455 = vmatmul.f32.gmra.mxu0 %v618
    %v1456 = vpop.f32.mrf.mxu0
    %v1457 = vadd.f32 %v1437, %v1456
    %1458 = vdwg.mxu0
    %vm1459 = vcmp.gt.f32.partialorder %v1457, 0.0
    %v1460 = vmul.f32 %v1457, 0.01
    %v1461 = vsel %vm1459, %v1457, %v1460
    %v1462 = vsel %vm865, %v1461, -9e+15
    %v1463 = vsel %vm416, %v1462, -inf
    %1464 = vmax.xlane.f32.xlu0 %v1463
    %v1465 = vpop.xlane.xlu0 %1464
    %v1466 = vsub.f32 %v1462, %v1465
    %v1467 = vmul.f32 %v1466, 1.442695
    %v1468 = vpow.pop %v1467
    %v1469 = vsel %vm416, %v1468, 0.0
    %1470 = vadd.xlane.f32.xlu0 %v1469
    %v1471 = vpop.xlane.xlu0 %1470
    %v1472 = vrcp.pop %v1471
    %v1473 = vmul.f32 %v1471, %v1472
    %v1474 = vsub.f32 1.0, %v1473
    %v1475 = vmul.f32 %v1472, %v1474
    %v1476 = vadd.f32 %v1472, %v1475
    %vm1477 = vweird.f32 %v1471
    %vm1478 = vweird.f32 %v1472
    %vm1479 = vmor %vm1477, %vm1478
    %v1480 = vsel %vm1479, %v1472, %v1476
    %v1481 = vand.u32 2147483647, %v1471
    %vm1482 = vcmp.eq.f32.partialorder %v1481, 8.507059e+37
    %v1483 = vand.u32 %v1471, 2147483648
    %v1484 = vor.u32 1.1754944e-38, %v1483
    %v1485 = vsel %vm1482, %v1484, %v1480
    %v1486 = vmul.f32 %v1468, %v1485
    %1487 = vrot.lane.b32.xlu0 %v1024, 96
    %v1488 = vpop.permute.xlu0 %1487
    %v1491 = vsel %vm416, %v1486, 0
    %1493 = vmatpush.msra.mxu0 0.0
    %1494 = vmatpush.msra.mxu0 0.0
    %1495 = vmatpush.msra.mxu0 0.0
    %1496 = vmatpush.msra.mxu0 0.0
    %1497 = vmatpush.msra.mxu0 0.0
    %1498 = vmatpush.msra.mxu0 0.0
    %1499 = vmatpush.msra.mxu0 0.0
    %1500 = vmatpush.msra.mxu0 0.0
    %1501 = vmatpush.msra.mxu0 0.0
    %1502 = vmatpush.msra.mxu0 0.0
    %1503 = vmatpush.msra.mxu0 0.0
    %1504 = vmatpush.msra.mxu0 0.0
    %1505 = vmatpush.msra.mxu0 0.0
    %1506 = vmatpush.msra.mxu0 0.0
    %1507 = vmatpush.msra.mxu0 0.0
    %1508 = vmatpush.msra.mxu0 %v1488
    %1509 = vmatmul.f32.gmra.mxu0 %v1491
    %v1510 = vpop.f32.mrf.mxu0
    %v1511 = vadd.f32 0.0, %v1510
    %1512 = vdwg.mxu0
    %v1514 = vsel %vm368, %v1511, 0
    %1516 = vmatpush.msra.mxu0 0.0
    %1517 = vmatpush.msra.mxu0 0.0
    %1518 = vmatpush.msra.mxu0 0.0
    %1519 = vmatpush.msra.mxu0 0.0
    %1520 = vmatpush.msra.mxu0 0.0
    %1521 = vmatpush.msra.mxu0 0.0
    %1522 = vmatpush.msra.mxu0 0.0
    %1523 = vmatpush.msra.mxu0 0.0
    %1524 = vmatpush.msra.mxu0 0.0
    %1525 = vmatpush.msra.mxu0 0.0
    %1526 = vmatpush.msra.mxu0 0.0
    %1527 = vmatpush.msra.mxu0 0.0
    %1528 = vmatpush.msra.mxu0 %v977
    %1529 = vmatpush.msra.mxu0 %v976
    %1530 = vmatpush.msra.mxu0 %v975
    %1531 = vmatpush.msra.mxu0 %v974
    %1532 = vmatmul.f32.gmra.mxu0 %v1514
    %v1533 = vpop.f32.mrf.mxu0
    %v1534 = vadd.f32 0.0, %v1533
    %1535 = vdwg.mxu0
    %v1536 = vadd.f32 %v1337, %v1534
    %v1538 = vperm.slane %v982, 0
    %v1540 = vadd.f32 %v1536, %v1538
    %vm1541 = vcmp.gt.f32.partialorder %v1540, 0.0
    %v1542 = vmul.f32 %v1540, 0.01
    %v1543 = vsel %vm1541, %v1540, %v1542
    %v1544 = vld [vmem:[#allocation22] sm:$0xff]
    %v1545 = vld [vmem:[#allocation22 + $0x8] sm:$0xff]
    %v1546 = vld [vmem:[#allocation22 + $0x10] sm:$0xff]
    %v1547 = vld [vmem:[#allocation22 + $0x18] sm:$0xff]
    %v1548 = vld [vmem:[#allocation22 + $0x20] sm:$0xff]
    %v1549 = vld [vmem:[#allocation22 + $0x28] sm:$0xff]
    %v1550 = vld [vmem:[#allocation22 + $0x30] sm:$0xff]
    %v1551 = vld [vmem:[#allocation22 + $0x38] sm:$0xff]
    %v1552 = vld [vmem:[#allocation22 + $0x40] sm:$0xff]
    %v1553 = vld [vmem:[#allocation22 + $0x48] sm:$0xff]
    %v1554 = vld [vmem:[#allocation22 + $0x50] sm:$0xff]
    %v1555 = vld [vmem:[#allocation22 + $0x58] sm:$0xff]
    %v1556 = vld [vmem:[#allocation23] sm:$0xff]
    %v1557 = vld [vmem:[#allocation23 + $0x8] sm:$0xff]
    %v1558 = vld [vmem:[#allocation23 + $0x10] sm:$0xff]
    %v1559 = vld [vmem:[#allocation23 + $0x18] sm:$0xff]
    %v1560 = vld [vmem:[#allocation23 + $0x20] sm:$0xff]
    %v1561 = vld [vmem:[#allocation23 + $0x28] sm:$0xff]
    %v1562 = vld [vmem:[#allocation23 + $0x30] sm:$0xff]
    %v1563 = vld [vmem:[#allocation23 + $0x38] sm:$0xff]
    %v1564 = vld [vmem:[#allocation23 + $0x40] sm:$0xff]
    %v1565 = vld [vmem:[#allocation23 + $0x48] sm:$0xff]
    %v1566 = vld [vmem:[#allocation23 + $0x50] sm:$0xff]
    %v1567 = vld [vmem:[#allocation23 + $0x58] sm:$0xff]
    %v1568 = vld [vmem:[#allocation25] sm:$0xff]
    %v1569 = vld [vmem:[#allocation26] sm:$0xff]
    %v1570 = vld [vmem:[#allocation26 + $0x8] sm:$0xff]
    %v1571 = vld [vmem:[#allocation26 + $0x10] sm:$0xff]
    %v1572 = vld [vmem:[#allocation26 + $0x18] sm:$0xff]
    %v1573 = vld [vmem:[#allocation26 + $0x20] sm:$0xff]
    %v1574 = vld [vmem:[#allocation26 + $0x28] sm:$0xff]
    %v1575 = vld [vmem:[#allocation26 + $0x30] sm:$0xff]
    %v1576 = vld [vmem:[#allocation26 + $0x38] sm:$0xff]
    %v1577 = vld [vmem:[#allocation26 + $0x40] sm:$0xff]
    %v1578 = vld [vmem:[#allocation26 + $0x48] sm:$0xff]
    %v1579 = vld [vmem:[#allocation26 + $0x50] sm:$0xff]
    %v1580 = vld [vmem:[#allocation26 + $0x58] sm:$0xff]
    %v1581 = vld [vmem:[#allocation28] sm:$0x1]
    %1582 = vmatpush.msra.mxu0 0.0
    %1583 = vmatpush.msra.mxu0 0.0
    %1584 = vmatpush.msra.mxu0 0.0
    %1585 = vmatpush.msra.mxu0 0.0
    %1586 = vmatpush.msra.mxu0 0.0
    %1587 = vmatpush.msra.mxu0 0.0
    %1588 = vmatpush.msra.mxu0 0.0
    %1589 = vmatpush.msra.mxu0 0.0
    %1590 = vmatpush.msra.mxu0 0.0
    %1591 = vmatpush.msra.mxu0 0.0
    %1592 = vmatpush.msra.mxu0 0.0
    %1593 = vmatpush.msra.mxu0 0.0
    %1594 = vmatpush.msra.mxu0 %v1551
    %1595 = vmatpush.msra.mxu0 %v1550
    %1596 = vmatpush.msra.mxu0 %v1549
    %1597 = vmatpush.msra.mxu0 %v1548
    %1598 = vmatmul.f32.gmra.mxu0 %v984
    %v1599 = vpop.f32.mrf.mxu0
    %v1600 = vadd.f32 0.0, %v1599
    %1601 = vdwg.mxu0
    %1602 = vmatpush.msra.mxu0 0.0
    %1603 = vmatpush.msra.mxu0 0.0
    %1604 = vmatpush.msra.mxu0 0.0
    %1605 = vmatpush.msra.mxu0 0.0
    %1606 = vmatpush.msra.mxu0 0.0
    %1607 = vmatpush.msra.mxu0 0.0
    %1608 = vmatpush.msra.mxu0 0.0
    %1609 = vmatpush.msra.mxu0 0.0
    %1610 = vmatpush.msra.mxu0 0.0
    %1611 = vmatpush.msra.mxu0 0.0
    %1612 = vmatpush.msra.mxu0 0.0
    %1613 = vmatpush.msra.mxu0 0.0
    %1614 = vmatpush.msra.mxu0 %v1547
    %1615 = vmatpush.msra.mxu0 %v1546
    %1616 = vmatpush.msra.mxu0 %v1545
    %1617 = vmatpush.msra.mxu0 %v1544
    %1618 = vmatmul.f32.gmra.mxu0 %v370
    %v1619 = vpop.f32.mrf.mxu0
    %v1620 = vadd.f32 %v1600, %v1619
    %1621 = vdwg.mxu0
    %v1623 = vsel %vm368, %v1543, 0
    %1625 = vmatpush.msra.mxu0 0.0
    %1626 = vmatpush.msra.mxu0 0.0
    %1627 = vmatpush.msra.mxu0 0.0
    %1628 = vmatpush.msra.mxu0 0.0
    %1629 = vmatpush.msra.mxu0 0.0
    %1630 = vmatpush.msra.mxu0 0.0
    %1631 = vmatpush.msra.mxu0 0.0
    %1632 = vmatpush.msra.mxu0 0.0
    %1633 = vmatpush.msra.mxu0 0.0
    %1634 = vmatpush.msra.mxu0 0.0
    %1635 = vmatpush.msra.mxu0 0.0
    %1636 = vmatpush.msra.mxu0 0.0
    %1637 = vmatpush.msra.mxu0 %v1555
    %1638 = vmatpush.msra.mxu0 %v1554
    %1639 = vmatpush.msra.mxu0 %v1553
    %1640 = vmatpush.msra.mxu0 %v1552
    %1641 = vmatmul.f32.gmra.mxu0 %v1623
    %v1642 = vpop.f32.mrf.mxu0
    %v1643 = vadd.f32 0.0, %v1642
    %1644 = vdwg.mxu0
    %v1645 = vadd.f32 %v1620, %v1643
    %v1647 = vsel %vm392, %v1645, 0
    %1649 = vmatpush.msra.mxu0 0.0
    %1650 = vmatpush.msra.mxu0 0.0
    %1651 = vmatpush.msra.mxu0 0.0
    %1652 = vmatpush.msra.mxu0 0.0
    %1653 = vmatpush.msra.mxu0 %v1567
    %1654 = vmatpush.msra.mxu0 %v1566
    %1655 = vmatpush.msra.mxu0 %v1565
    %1656 = vmatpush.msra.mxu0 %v1564
    %1657 = vmatpush.msra.mxu0 %v1563
    %1658 = vmatpush.msra.mxu0 %v1562
    %1659 = vmatpush.msra.mxu0 %v1561
    %1660 = vmatpush.msra.mxu0 %v1560
    %1661 = vmatpush.msra.mxu0 %v1559
    %1662 = vmatpush.msra.mxu0 %v1558
    %1663 = vmatpush.msra.mxu0 %v1557
    %1664 = vmatpush.msra.mxu0 %v1556
    %1665 = vmatmul.f32.gmra.mxu0 %v1647
    %v1666 = vpop.f32.mrf.mxu0
    %v1667 = vadd.f32 0.0, %v1666
    %1668 = vdwg.mxu0
    %v1670 = vsel %vm416, %v1667, 0
    %1672 = vmatpush.msra.mxu0 0.0
    %1673 = vmatpush.msra.mxu0 0.0
    %1674 = vmatpush.msra.mxu0 0.0
    %1675 = vmatpush.msra.mxu0 0.0
    %1676 = vmatpush.msra.mxu0 0.0
    %1677 = vmatpush.msra.mxu0 0.0
    %1678 = vmatpush.msra.mxu0 0.0
    %1679 = vmatpush.msra.mxu0 0.0
    %1680 = vmatpush.msra.mxu0 0.0
    %1681 = vmatpush.msra.mxu0 0.0
    %1682 = vmatpush.msra.mxu0 0.0
    %1683 = vmatpush.msra.mxu0 0.0
    %1684 = vmatpush.msra.mxu0 0.0
    %1685 = vmatpush.msra.mxu0 0.0
    %1686 = vmatpush.msra.mxu0 0.0
    %1687 = vmatpush.msra.mxu0 %v1568
    %1688 = vmatmul.f32.gmra.mxu0 %v1670
    %v1689 = vpop.f32.mrf.mxu0
    %v1690 = vadd.f32 0.0, %v1689
    %1691 = vdwg.mxu0
    %1692 = vmatpush.msra.mxu0 0.0
    %1693 = vmatpush.msra.mxu0 0.0
    %1694 = vmatpush.msra.mxu0 0.0
    %1695 = vmatpush.msra.mxu0 0.0
    %1696 = vmatpush.msra.mxu0 0.0
    %1697 = vmatpush.msra.mxu0 0.0
    %1698 = vmatpush.msra.mxu0 0.0
    %1699 = vmatpush.msra.mxu0 0.0
    %1700 = vmatpush.msra.mxu0 0.0
    %1701 = vmatpush.msra.mxu0 0.0
    %1702 = vmatpush.msra.mxu0 0.0
    %1703 = vmatpush.msra.mxu0 0.0
    %1704 = vmatpush.msra.mxu0 0.0
    %1705 = vmatpush.msra.mxu0 0.0
    %1706 = vmatpush.msra.mxu0 0.0
    %1707 = vmatpush.msra.mxu0 %v1690
    %1708 = vmatmul.f32.gmra.mxu0 %v441
    %v1709 = vpop.f32.mrf.mxu0
    %v1710 = vadd.f32 0.0, %v1709
    %1711 = vmatmul.f32.gmra.mxu0 %v444
    %v1712 = vpop.f32.mrf.mxu0
    %v1713 = vadd.f32 0.0, %v1712
    %1714 = vmatmul.f32.gmra.mxu0 %v447
    %v1715 = vpop.f32.mrf.mxu0
    %v1716 = vadd.f32 0.0, %v1715
    %1717 = vmatmul.f32.gmra.mxu0 %v450
    %v1718 = vpop.f32.mrf.mxu0
    %v1719 = vadd.f32 0.0, %v1718
    %1720 = vmatmul.f32.gmra.mxu0 %v453
    %v1721 = vpop.f32.mrf.mxu0
    %v1722 = vadd.f32 0.0, %v1721
    %1723 = vmatmul.f32.gmra.mxu0 %v456
    %v1724 = vpop.f32.mrf.mxu0
    %v1725 = vadd.f32 0.0, %v1724
    %1726 = vmatmul.f32.gmra.mxu0 %v459
    %v1727 = vpop.f32.mrf.mxu0
    %v1728 = vadd.f32 0.0, %v1727
    %1729 = vmatmul.f32.gmra.mxu0 %v462
    %v1730 = vpop.f32.mrf.mxu0
    %v1731 = vadd.f32 0.0, %v1730
    %1732 = vdwg.mxu0
    %1734 = vset.pattern.permute.xlu0 0
    %1735 = vperm.xlu0 %1734, %v1710
    %v1736 = vpop.permute.xlu0 %1735
    %1739 = vset.pattern.permute.xlu0 0
    %1740 = vperm.xlu0 %1739, %v1713
    %v1741 = vpop.permute.xlu0 %1740
    %1744 = vset.pattern.permute.xlu0 0
    %1745 = vperm.xlu0 %1744, %v1716
    %v1746 = vpop.permute.xlu0 %1745
    %1749 = vset.pattern.permute.xlu0 0
    %1750 = vperm.xlu0 %1749, %v1719
    %v1751 = vpop.permute.xlu0 %1750
    %1754 = vset.pattern.permute.xlu0 0
    %1755 = vperm.xlu0 %1754, %v1722
    %v1756 = vpop.permute.xlu0 %1755
    %1759 = vset.pattern.permute.xlu0 0
    %1760 = vperm.xlu0 %1759, %v1725
    %v1761 = vpop.permute.xlu0 %1760
    %1764 = vset.pattern.permute.xlu0 0
    %1765 = vperm.xlu0 %1764, %v1728
    %v1766 = vpop.permute.xlu0 %1765
    %1769 = vset.pattern.permute.xlu0 0
    %1770 = vperm.xlu0 %1769, %v1731
    %v1771 = vpop.permute.xlu0 %1770
    %v1773 = vmul.f32 %v329, %v1736
    %v1774 = vmul.f32 %v330, %v1741
    %v1775 = vmul.f32 %v331, %v1746
    %v1776 = vmul.f32 %v332, %v1751
    %v1777 = vmul.f32 %v333, %v1756
    %v1778 = vmul.f32 %v334, %v1761
    %v1779 = vmul.f32 %v335, %v1766
    %v1780 = vmul.f32 %v336, %v1771
    %1781 = vset.pattern.permute.xlu0 2
    %1782 = vperm.xlu0 %1781, %v1710
    %v1783 = vpop.permute.xlu0 %1782
    %1785 = vset.pattern.permute.xlu0 2
    %1786 = vperm.xlu0 %1785, %v1713
    %v1787 = vpop.permute.xlu0 %1786
    %1789 = vset.pattern.permute.xlu0 2
    %1790 = vperm.xlu0 %1789, %v1716
    %v1791 = vpop.permute.xlu0 %1790
    %1793 = vset.pattern.permute.xlu0 2
    %1794 = vperm.xlu0 %1793, %v1719
    %v1795 = vpop.permute.xlu0 %1794
    %1797 = vset.pattern.permute.xlu0 2
    %1798 = vperm.xlu0 %1797, %v1722
    %v1799 = vpop.permute.xlu0 %1798
    %1801 = vset.pattern.permute.xlu0 2
    %1802 = vperm.xlu0 %1801, %v1725
    %v1803 = vpop.permute.xlu0 %1802
    %1805 = vset.pattern.permute.xlu0 2
    %1806 = vperm.xlu0 %1805, %v1728
    %v1807 = vpop.permute.xlu0 %1806
    %1809 = vset.pattern.permute.xlu0 2
    %1810 = vperm.xlu0 %1809, %v1731
    %v1811 = vpop.permute.xlu0 %1810
    %v1813 = vmul.f32 %v329, %v1783
    %v1814 = vmul.f32 %v330, %v1787
    %v1815 = vmul.f32 %v331, %v1791
    %v1816 = vmul.f32 %v332, %v1795
    %v1817 = vmul.f32 %v333, %v1799
    %v1818 = vmul.f32 %v334, %v1803
    %v1819 = vmul.f32 %v335, %v1807
    %v1820 = vmul.f32 %v336, %v1811
    %1821 = vmatpush.msra.mxu0 0.0
    %1822 = vmatpush.msra.mxu0 0.0
    %1823 = vmatpush.msra.mxu0 0.0
    %1824 = vmatpush.msra.mxu0 0.0
    %1825 = vmatpush.msra.mxu0 0.0
    %1826 = vmatpush.msra.mxu0 0.0
    %1827 = vmatpush.msra.mxu0 0.0
    %1828 = vmatpush.msra.mxu0 0.0
    %1829 = vmatpush.msra.mxu0 %v1820
    %1830 = vmatpush.msra.mxu0 %v1819
    %1831 = vmatpush.msra.mxu0 %v1818
    %1832 = vmatpush.msra.mxu0 %v1817
    %1833 = vmatpush.msra.mxu0 %v1816
    %1834 = vmatpush.msra.mxu0 %v1815
    %1835 = vmatpush.msra.mxu0 %v1814
    %1836 = vmatpush.msra.mxu0 %v1813
    %1837 = vmatmul.f32.gmra.mxu0 %v595
    %v1838 = vpop.f32.mrf.mxu0
    %v1839 = vadd.f32 0.0, %v1838
    %1840 = vdwg.mxu0
    %1841 = vmatpush.msra.mxu0 0.0
    %1842 = vmatpush.msra.mxu0 0.0
    %1843 = vmatpush.msra.mxu0 0.0
    %1844 = vmatpush.msra.mxu0 0.0
    %1845 = vmatpush.msra.mxu0 0.0
    %1846 = vmatpush.msra.mxu0 0.0
    %1847 = vmatpush.msra.mxu0 0.0
    %1848 = vmatpush.msra.mxu0 0.0
    %1849 = vmatpush.msra.mxu0 %v1780
    %1850 = vmatpush.msra.mxu0 %v1779
    %1851 = vmatpush.msra.mxu0 %v1778
    %1852 = vmatpush.msra.mxu0 %v1777
    %1853 = vmatpush.msra.mxu0 %v1776
    %1854 = vmatpush.msra.mxu0 %v1775
    %1855 = vmatpush.msra.mxu0 %v1774
    %1856 = vmatpush.msra.mxu0 %v1773
    %1857 = vmatmul.f32.gmra.mxu0 %v618
    %v1858 = vpop.f32.mrf.mxu0
    %v1859 = vadd.f32 %v1839, %v1858
    %1860 = vdwg.mxu0
    %vm1861 = vcmp.gt.f32.partialorder %v1859, 0.0
    %v1862 = vmul.f32 %v1859, 0.01
    %v1863 = vsel %vm1861, %v1859, %v1862
    %v1864 = vsel %vm644, %v1863, -9e+15
    %v1865 = vsel %vm416, %v1864, -inf
    %1866 = vmax.xlane.f32.xlu0 %v1865
    %v1867 = vpop.xlane.xlu0 %1866
    %v1868 = vsub.f32 %v1864, %v1867
    %v1869 = vmul.f32 %v1868, 1.442695
    %v1870 = vpow.pop %v1869
    %v1871 = vsel %vm416, %v1870, 0.0
    %1872 = vadd.xlane.f32.xlu0 %v1871
    %v1873 = vpop.xlane.xlu0 %1872
    %v1874 = vrcp.pop %v1873
    %v1875 = vmul.f32 %v1873, %v1874
    %v1876 = vsub.f32 1.0, %v1875
    %v1877 = vmul.f32 %v1874, %v1876
    %v1878 = vadd.f32 %v1874, %v1877
    %vm1879 = vweird.f32 %v1873
    %vm1880 = vweird.f32 %v1874
    %vm1881 = vmor %vm1879, %vm1880
    %v1882 = vsel %vm1881, %v1874, %v1878
    %v1883 = vand.u32 2147483647, %v1873
    %vm1884 = vcmp.eq.f32.partialorder %v1883, 8.507059e+37
    %v1885 = vand.u32 %v1873, 2147483648
    %v1886 = vor.u32 1.1754944e-38, %v1885
    %v1887 = vsel %vm1884, %v1886, %v1882
    %v1888 = vmul.f32 %v1870, %v1887
    %v1890 = vsel %vm416, %v1888, 0
    %1892 = vmatpush.msra.mxu0 0.0
    %1893 = vmatpush.msra.mxu0 0.0
    %1894 = vmatpush.msra.mxu0 0.0
    %1895 = vmatpush.msra.mxu0 0.0
    %1896 = vmatpush.msra.mxu0 0.0
    %1897 = vmatpush.msra.mxu0 0.0
    %1898 = vmatpush.msra.mxu0 0.0
    %1899 = vmatpush.msra.mxu0 0.0
    %1900 = vmatpush.msra.mxu0 0.0
    %1901 = vmatpush.msra.mxu0 0.0
    %1902 = vmatpush.msra.mxu0 0.0
    %1903 = vmatpush.msra.mxu0 0.0
    %1904 = vmatpush.msra.mxu0 0.0
    %1905 = vmatpush.msra.mxu0 0.0
    %1906 = vmatpush.msra.mxu0 0.0
    %1907 = vmatpush.msra.mxu0 %v1645
    %1908 = vmatmul.f32.gmra.mxu0 %v1890
    %v1909 = vpop.f32.mrf.mxu0
    %v1910 = vadd.f32 0.0, %v1909
    %1911 = vdwg.mxu0
    %v1913 = vsel %vm368, %v1910, 0
    %1915 = vmatpush.msra.mxu0 0.0
    %1916 = vmatpush.msra.mxu0 0.0
    %1917 = vmatpush.msra.mxu0 0.0
    %1918 = vmatpush.msra.mxu0 0.0
    %1919 = vmatpush.msra.mxu0 0.0
    %1920 = vmatpush.msra.mxu0 0.0
    %1921 = vmatpush.msra.mxu0 0.0
    %1922 = vmatpush.msra.mxu0 0.0
    %1923 = vmatpush.msra.mxu0 0.0
    %1924 = vmatpush.msra.mxu0 0.0
    %1925 = vmatpush.msra.mxu0 0.0
    %1926 = vmatpush.msra.mxu0 0.0
    %1927 = vmatpush.msra.mxu0 %v1572
    %1928 = vmatpush.msra.mxu0 %v1571
    %1929 = vmatpush.msra.mxu0 %v1570
    %1930 = vmatpush.msra.mxu0 %v1569
    %1931 = vmatmul.f32.gmra.mxu0 %v1913
    %v1932 = vpop.f32.mrf.mxu0
    %v1933 = vadd.f32 0.0, %v1932
    %1934 = vdwg.mxu0
    %1935 = vrot.lane.b32.xlu0 %v1645, 64
    %v1936 = vpop.permute.xlu0 %1935
    %v1937 = vsel %vm368, %v1936, 0
    %1939 = vmatpush.msra.mxu0 0.0
    %1940 = vmatpush.msra.mxu0 0.0
    %1941 = vmatpush.msra.mxu0 0.0
    %1942 = vmatpush.msra.mxu0 0.0
    %1943 = vmatpush.msra.mxu0 0.0
    %1944 = vmatpush.msra.mxu0 0.0
    %1945 = vmatpush.msra.mxu0 0.0
    %1946 = vmatpush.msra.mxu0 0.0
    %1947 = vmatpush.msra.mxu0 0.0
    %1948 = vmatpush.msra.mxu0 0.0
    %1949 = vmatpush.msra.mxu0 0.0
    %1950 = vmatpush.msra.mxu0 0.0
    %1951 = vmatpush.msra.mxu0 %v1580
    %1952 = vmatpush.msra.mxu0 %v1579
    %1953 = vmatpush.msra.mxu0 %v1578
    %1954 = vmatpush.msra.mxu0 %v1577
    %1955 = vmatmul.f32.gmra.mxu0 %v1937
    %v1956 = vpop.f32.mrf.mxu0
    %v1957 = vadd.f32 %v1933, %v1956
    %1958 = vdwg.mxu0
    %1959 = vset.pattern.permute.xlu0 1
    %1960 = vperm.xlu0 %1959, %v1710
    %v1961 = vpop.permute.xlu0 %1960
    %1963 = vset.pattern.permute.xlu0 1
    %1964 = vperm.xlu0 %1963, %v1713
    %v1965 = vpop.permute.xlu0 %1964
    %1967 = vset.pattern.permute.xlu0 1
    %1968 = vperm.xlu0 %1967, %v1716
    %v1969 = vpop.permute.xlu0 %1968
    %1971 = vset.pattern.permute.xlu0 1
    %1972 = vperm.xlu0 %1971, %v1719
    %v1973 = vpop.permute.xlu0 %1972
    %1975 = vset.pattern.permute.xlu0 1
    %1976 = vperm.xlu0 %1975, %v1722
    %v1977 = vpop.permute.xlu0 %1976
    %1979 = vset.pattern.permute.xlu0 1
    %1980 = vperm.xlu0 %1979, %v1725
    %v1981 = vpop.permute.xlu0 %1980
    %1983 = vset.pattern.permute.xlu0 1
    %1984 = vperm.xlu0 %1983, %v1728
    %v1985 = vpop.permute.xlu0 %1984
    %1987 = vset.pattern.permute.xlu0 1
    %1988 = vperm.xlu0 %1987, %v1731
    %v1989 = vpop.permute.xlu0 %1988
    %v1991 = vmul.f32 %v329, %v1961
    %v1992 = vmul.f32 %v330, %v1965
    %v1993 = vmul.f32 %v331, %v1969
    %v1994 = vmul.f32 %v332, %v1973
    %v1995 = vmul.f32 %v333, %v1977
    %v1996 = vmul.f32 %v334, %v1981
    %v1997 = vmul.f32 %v335, %v1985
    %v1998 = vmul.f32 %v336, %v1989
    %1999 = vset.pattern.permute.xlu0 3
    %2000 = vperm.xlu0 %1999, %v1710
    %v2001 = vpop.permute.xlu0 %2000
    %2003 = vset.pattern.permute.xlu0 3
    %2004 = vperm.xlu0 %2003, %v1713
    %v2005 = vpop.permute.xlu0 %2004
    %2007 = vset.pattern.permute.xlu0 3
    %2008 = vperm.xlu0 %2007, %v1716
    %v2009 = vpop.permute.xlu0 %2008
    %2011 = vset.pattern.permute.xlu0 3
    %2012 = vperm.xlu0 %2011, %v1719
    %v2013 = vpop.permute.xlu0 %2012
    %2015 = vset.pattern.permute.xlu0 3
    %2016 = vperm.xlu0 %2015, %v1722
    %v2017 = vpop.permute.xlu0 %2016
    %2019 = vset.pattern.permute.xlu0 3
    %2020 = vperm.xlu0 %2019, %v1725
    %v2021 = vpop.permute.xlu0 %2020
    %2023 = vset.pattern.permute.xlu0 3
    %2024 = vperm.xlu0 %2023, %v1728
    %v2025 = vpop.permute.xlu0 %2024
    %2027 = vset.pattern.permute.xlu0 3
    %2028 = vperm.xlu0 %2027, %v1731
    %v2029 = vpop.permute.xlu0 %2028
    %v2031 = vmul.f32 %v329, %v2001
    %v2032 = vmul.f32 %v330, %v2005
    %v2033 = vmul.f32 %v331, %v2009
    %v2034 = vmul.f32 %v332, %v2013
    %v2035 = vmul.f32 %v333, %v2017
    %v2036 = vmul.f32 %v334, %v2021
    %v2037 = vmul.f32 %v335, %v2025
    %v2038 = vmul.f32 %v336, %v2029
    %2039 = vmatpush.msra.mxu0 0.0
    %2040 = vmatpush.msra.mxu0 0.0
    %2041 = vmatpush.msra.mxu0 0.0
    %2042 = vmatpush.msra.mxu0 0.0
    %2043 = vmatpush.msra.mxu0 0.0
    %2044 = vmatpush.msra.mxu0 0.0
    %2045 = vmatpush.msra.mxu0 0.0
    %2046 = vmatpush.msra.mxu0 0.0
    %2047 = vmatpush.msra.mxu0 %v2038
    %2048 = vmatpush.msra.mxu0 %v2037
    %2049 = vmatpush.msra.mxu0 %v2036
    %2050 = vmatpush.msra.mxu0 %v2035
    %2051 = vmatpush.msra.mxu0 %v2034
    %2052 = vmatpush.msra.mxu0 %v2033
    %2053 = vmatpush.msra.mxu0 %v2032
    %2054 = vmatpush.msra.mxu0 %v2031
    %2055 = vmatmul.f32.gmra.mxu0 %v595
    %v2056 = vpop.f32.mrf.mxu0
    %v2057 = vadd.f32 0.0, %v2056
    %2058 = vdwg.mxu0
    %2059 = vmatpush.msra.mxu0 0.0
    %2060 = vmatpush.msra.mxu0 0.0
    %2061 = vmatpush.msra.mxu0 0.0
    %2062 = vmatpush.msra.mxu0 0.0
    %2063 = vmatpush.msra.mxu0 0.0
    %2064 = vmatpush.msra.mxu0 0.0
    %2065 = vmatpush.msra.mxu0 0.0
    %2066 = vmatpush.msra.mxu0 0.0
    %2067 = vmatpush.msra.mxu0 %v1998
    %2068 = vmatpush.msra.mxu0 %v1997
    %2069 = vmatpush.msra.mxu0 %v1996
    %2070 = vmatpush.msra.mxu0 %v1995
    %2071 = vmatpush.msra.mxu0 %v1994
    %2072 = vmatpush.msra.mxu0 %v1993
    %2073 = vmatpush.msra.mxu0 %v1992
    %2074 = vmatpush.msra.mxu0 %v1991
    %2075 = vmatmul.f32.gmra.mxu0 %v618
    %v2076 = vpop.f32.mrf.mxu0
    %v2077 = vadd.f32 %v2057, %v2076
    %2078 = vdwg.mxu0
    %vm2079 = vcmp.gt.f32.partialorder %v2077, 0.0
    %v2080 = vmul.f32 %v2077, 0.01
    %v2081 = vsel %vm2079, %v2077, %v2080
    %v2082 = vsel %vm865, %v2081, -9e+15
    %v2083 = vsel %vm416, %v2082, -inf
    %2084 = vmax.xlane.f32.xlu0 %v2083
    %v2085 = vpop.xlane.xlu0 %2084
    %v2086 = vsub.f32 %v2082, %v2085
    %v2087 = vmul.f32 %v2086, 1.442695
    %v2088 = vpow.pop %v2087
    %v2089 = vsel %vm416, %v2088, 0.0
    %2090 = vadd.xlane.f32.xlu0 %v2089
    %v2091 = vpop.xlane.xlu0 %2090
    %v2092 = vrcp.pop %v2091
    %v2093 = vmul.f32 %v2091, %v2092
    %v2094 = vsub.f32 1.0, %v2093
    %v2095 = vmul.f32 %v2092, %v2094
    %v2096 = vadd.f32 %v2092, %v2095
    %vm2097 = vweird.f32 %v2091
    %vm2098 = vweird.f32 %v2092
    %vm2099 = vmor %vm2097, %vm2098
    %v2100 = vsel %vm2099, %v2092, %v2096
    %v2101 = vand.u32 2147483647, %v2091
    %vm2102 = vcmp.eq.f32.partialorder %v2101, 8.507059e+37
    %v2103 = vand.u32 %v2091, 2147483648
    %v2104 = vor.u32 1.1754944e-38, %v2103
    %v2105 = vsel %vm2102, %v2104, %v2100
    %v2106 = vmul.f32 %v2088, %v2105
    %2107 = vrot.lane.b32.xlu0 %v1645, 96
    %v2108 = vpop.permute.xlu0 %2107
    %v2111 = vsel %vm416, %v2106, 0
    %2113 = vmatpush.msra.mxu0 0.0
    %2114 = vmatpush.msra.mxu0 0.0
    %2115 = vmatpush.msra.mxu0 0.0
    %2116 = vmatpush.msra.mxu0 0.0
    %2117 = vmatpush.msra.mxu0 0.0
    %2118 = vmatpush.msra.mxu0 0.0
    %2119 = vmatpush.msra.mxu0 0.0
    %2120 = vmatpush.msra.mxu0 0.0
    %2121 = vmatpush.msra.mxu0 0.0
    %2122 = vmatpush.msra.mxu0 0.0
    %2123 = vmatpush.msra.mxu0 0.0
    %2124 = vmatpush.msra.mxu0 0.0
    %2125 = vmatpush.msra.mxu0 0.0
    %2126 = vmatpush.msra.mxu0 0.0
    %2127 = vmatpush.msra.mxu0 0.0
    %2128 = vmatpush.msra.mxu0 %v2108
    %2129 = vmatmul.f32.gmra.mxu0 %v2111
    %v2130 = vpop.f32.mrf.mxu0
    %v2131 = vadd.f32 0.0, %v2130
    %2132 = vdwg.mxu0
    %v2134 = vsel %vm368, %v2131, 0
    %2136 = vmatpush.msra.mxu0 0.0
    %2137 = vmatpush.msra.mxu0 0.0
    %2138 = vmatpush.msra.mxu0 0.0
    %2139 = vmatpush.msra.mxu0 0.0
    %2140 = vmatpush.msra.mxu0 0.0
    %2141 = vmatpush.msra.mxu0 0.0
    %2142 = vmatpush.msra.mxu0 0.0
    %2143 = vmatpush.msra.mxu0 0.0
    %2144 = vmatpush.msra.mxu0 0.0
    %2145 = vmatpush.msra.mxu0 0.0
    %2146 = vmatpush.msra.mxu0 0.0
    %2147 = vmatpush.msra.mxu0 0.0
    %2148 = vmatpush.msra.mxu0 %v1576
    %2149 = vmatpush.msra.mxu0 %v1575
    %2150 = vmatpush.msra.mxu0 %v1574
    %2151 = vmatpush.msra.mxu0 %v1573
    %2152 = vmatmul.f32.gmra.mxu0 %v2134
    %v2153 = vpop.f32.mrf.mxu0
    %v2154 = vadd.f32 0.0, %v2153
    %2155 = vdwg.mxu0
    %v2156 = vadd.f32 %v1957, %v2154
    %v2158 = vperm.slane %v1581, 0
    %v2160 = vadd.f32 %v2156, %v2158
    %vm2161 = vcmp.gt.f32.partialorder %v2160, 0.0
    %v2162 = vmul.f32 %v2160, 0.01
    %v2163 = vsel %vm2161, %v2160, %v2162
    %2164 = vst.msk [vmem:[#allocation29] sm:$0xff] %vm368, %v2163
    // Predicated region
    $region154: #{_lambda_.1} parent=1 // pred_check
      _
    $region155: #{_lambda_.1} parent=1 // pred_check_branch
      %2166 = sbr.rel (0) target = $region157
    $region156: #{_lambda_.1} parent=1 // pred_region
      %2168 = vsyncadd [#allocation4], 0
      %s2170 = sshll.u32 [#allocation29], 4
      %s2171 = int_to_ptr.vmem [resolvable:$true] %s2170
      %s2172 = sshll.u32 %s21, 4
      %s2173 = int_to_ptr.hbm [resolvable:$true] %s2172
      %2175 = dma.vmem_to_hbm [thread:$0]  %s2171, 128, %s2173, [#allocation4]
    $region157: #{_lambda_.1} parent=1 // pred_fallthru
      _
    // Predicated region
    $region158: #{_lambda_.1} parent=1 // pred_check
      _
    $region159: #{_lambda_.1} parent=1 // pred_check_branch
      %2177 = sbr.rel (0) target = $region161
    $region160: #{_lambda_.1} parent=1 // pred_region
      %2179 = dma.done [#allocation4], 128
    $region161: #{_lambda_.1} parent=1 // pred_fallthru
      _
    %2180 = vsyncpa [#allocation3], 1
    %2181 = vsyncpa [#allocation6], 1
    %2182 = vsyncpa [#allocation9], 1
    %2183 = vsyncpa [#allocation12], 1
    %2184 = vsyncpa [#allocation15], 1
    %2185 = vsyncpa [#allocation18], 1
    %2186 = vsyncpa [#allocation21], 1
    %2187 = vsyncpa [#allocation24], 1
    %2188 = vsyncpa [#allocation27], 1
    %2189 = vsyncpa [#allocation4], 1

</llo_original>
